<compile_context>
chip_gen: v6e
topology: v6e:2x2x1
jax: 0.10.0
libtpu: 0.0.40
codegen_flags: <defaults>
</compile_context>

<pallas_src>
import functools
import math

import jax
import jax.numpy as jnp
from jax import lax
from jax.experimental import pallas as pl
from jax.experimental.pallas import tpu as pltpu


# ----------------------------- config ---------------------------------------
class Config:
    block_size = 16
    padded_vocab_size = 128
    n_layer = 2
    n_head = 4
    n_embd = 32
    head_size = 8                       # n_embd // n_head
    n_query_groups = 4                  # == n_head -> multi-head attention
    rotary_percentage = 1.0
    rope_n_elem = 8                     # int(rotary_percentage * head_size)
    rope_base = 10000
    rope_condense_ratio = 1
    bias = True
    lm_head_bias = False
    norm_eps = 1e-5
    intermediate_size = 128             # 4 * n_embd (GptNeoxMLP)
    parallel_residual = True
    shared_attention_norm = False


_INV_SQRT2 = 0.7071067811865476
_MXU_DTYPE = jnp.bfloat16               # matmul operand dtype (f32 accumulation)
_W_DTYPE = jnp.bfloat16                 # weight storage dtype in HBM
_NEG_INF = -1e30                        # causal mask value, applied in f32
_GELU_TANH_APPROX = False               # False == torch F.gelu(approximate='none')


def _vmem_limit_bytes():
    """Generation-aware scoped-VMEM limit (v5e/v6e: 128 MiB phys, v7x: 64 MiB)."""
    try:
        cap = int(pltpu.get_tpu_info().vmem_capacity_bytes)
        return max(32 << 20, min((cap * 3) // 4, 100 << 20))
    except Exception:
        return 48 << 20                 # conservative fallback, safe on all gens


_VMEM_LIMIT = _vmem_limit_bytes()
_BIG_VMEM = _VMEM_LIMIT >= (64 << 20)
# Preferred tiles: bigger on v5e/v6e (128 MiB VMEM), tighter on v7x (64 MiB).
_TM = 512 if _BIG_VMEM else 256
_TN = 512 if _BIG_VMEM else 256
_TK = 1024 if _BIG_VMEM else 512


def _pick_tile(dim, pref, align):
    """Largest divisor of `dim` that is <= `pref`, preferring `align` multiples.

    Never silently falls back to the FULL dimension (which for a realistic
    vocab / hidden size would blow the VMEM tile budget, esp. on v7x)."""
    if dim <= pref:
        return dim
    t = (pref // align) * align
    while t >= align:
        if dim % t == 0:
            return t
        t -= align
    for t in range(pref, 0, -1):        # no aligned divisor: largest divisor
        if dim % t == 0:
            return t
    return dim


# ----------------------------- LayerNorm (standalone) ------------------------
def _ln_kernel(x_ref, g_ref, b_ref, o_ref, *, eps):
    x = x_ref[...].astype(jnp.float32)
    mean = jnp.mean(x, axis=-1, keepdims=True)
    var = jnp.mean((x - mean) * (x - mean), axis=-1, keepdims=True)
    y = (x - mean) * lax.rsqrt(var + eps)
    y = y * g_ref[...].astype(jnp.float32) + b_ref[...].astype(jnp.float32)
    o_ref[...] = y.astype(o_ref.dtype)


def layer_norm(x2d, g, b, eps):
    """One-pass LayerNorm emitting bf16 (fallback when LN cannot be fused)."""
    M, K = x2d.shape
    tm = _pick_tile(M, 1024, 8)
    return pl.pallas_call(
        functools.partial(_ln_kernel, eps=eps),
        out_shape=jax.ShapeDtypeStruct((M, K), jnp.bfloat16),
        grid=(M // tm,),
        in_specs=[pl.BlockSpec((tm, K), lambda i: (i, 0)),
                  pl.BlockSpec((1, K), lambda i: (0, 0)),
                  pl.BlockSpec((1, K), lambda i: (0, 0))],
        out_specs=pl.BlockSpec((tm, K), lambda i: (i, 0)),
        compiler_params=pltpu.CompilerParams(
            dimension_semantics=("parallel",), vmem_limit_bytes=_VMEM_LIMIT),
    )(x2d, g.reshape(1, K), b.reshape(1, K))


# ----------------------- fused (LN +) matmul (+ epilogue) --------------------
def _linear_kernel(*refs, has_ln, eps, has_bias, activation, has_residual):
    it = iter(refs)
    x_ref = next(it)
    if has_ln:
        g_ref = next(it)
        be_ref = next(it)
    w_ref = next(it)
    b_ref = next(it) if has_bias else None
    r_ref = next(it) if has_residual else None
    o_ref = next(it)
    acc_ref = next(it)

    # NOTE: the K (reduction) axis MUST stay the innermost grid axis and be
    # marked "arbitrary"; acc_ref persists across it (accumulator pattern).
    k = pl.program_id(2)

    @pl.when(k == 0)
    def _():
        acc_ref[...] = jnp.zeros_like(acc_ref)

    x = x_ref[...].astype(jnp.float32)
    if has_ln:
        # torch.nn.LayerNorm: biased variance, affine in f32.
        mean = jnp.mean(x, axis=-1, keepdims=True)
        var = jnp.mean((x - mean) * (x - mean), axis=-1, keepdims=True)
        x = (x - mean) * lax.rsqrt(var + eps)
        x = x * g_ref[...].astype(jnp.float32) + be_ref[...].astype(jnp.float32)

    acc_ref[...] += jnp.dot(x.astype(_MXU_DTYPE), w_ref[...].astype(_MXU_DTYPE),
                            preferred_element_type=jnp.float32)

    @pl.when(k == pl.num_programs(2) - 1)
    def _():
        y = acc_ref[...]
        if has_bias:
            y = y + b_ref[...].astype(jnp.float32)
        if activation == "gelu":
            if _GELU_TANH_APPROX:
                y = 0.5 * y * (1.0 + jnp.tanh(
                    0.7978845608028654 * (y + 0.044715 * y * y * y)))
            else:
                # exact erf gelu == torch.nn.functional.gelu(approximate='none')
                y = 0.5 * y * (1.0 + lax.erf(y * _INV_SQRT2))
        if has_residual:
            y = y + r_ref[...].astype(jnp.float32)
        o_ref[...] = y.astype(o_ref.dtype)


def _ln_fused_fits(tm, K, tn):
    """Conservative double-buffered VMEM estimate for the LN-fused (tk=K) path."""
    x_bytes = 2 * tm * K * 4            # f32 activation tile, double-buffered
    w_bytes = 2 * K * tn * 2            # bf16 weight tile, double-buffered
    out_bytes = 2 * tm * tn * 4 + tm * tn * 4   # output bufs + f32 accumulator
    misc = 8 * (K + tn) * 4
    return (x_bytes + w_bytes + out_bytes + misc) < int(0.7 * _VMEM_LIMIT)


def fused_linear(x2d, w_t, bias=None, *, ln=None, eps=1e-5, activation=None,
                 residual=None):
    """y = [residual +] act( LN?(x2d) @ w_t + bias ), tiled over (M, N, K)."""
    out_dtype = jnp.float32 if x2d.dtype == jnp.float32 else x2d.dtype
    M, K = x2d.shape
    K2, N = w_t.shape
    assert K == K2
    tm = _pick_tile(M, _TM, 8)
    tn = _pick_tile(N, _TN, 128)

    if ln is not None:
        # Fusing LN forces tk = K (whole feature row in one tile).  Bail out to
        # a separate one-pass LN (bf16 output, K then tiled) when (a) the output
        # needs several column tiles (would re-normalize x per tile, e.g. a big
        # vocab lm_head) or (b) the f32 (tm, K) tile + weight tile would not fit
        # the scoped VMEM limit (v7x only has 64 MiB physical).
        if tn != N or not _ln_fused_fits(tm, K, tn):
            x2d = layer_norm(x2d, ln[0], ln[1], eps)
            ln = None

    tk = K if ln is not None else _pick_tile(K, _TK, 128)

    args = [x2d]
    in_specs = [pl.BlockSpec((tm, tk), lambda i, j, k: (i, k))]
    if ln is not None:
        ln_w, ln_b = ln
        args += [ln_w.reshape(1, K), ln_b.reshape(1, K)]
        in_specs += [pl.BlockSpec((1, tk), lambda i, j, k: (0, 0)),
                     pl.BlockSpec((1, tk), lambda i, j, k: (0, 0))]
    args.append(w_t)
    in_specs.append(pl.BlockSpec((tk, tn), lambda i, j, k: (k, j)))
    if bias is not None:
        args.append(bias.reshape(1, N))
        in_specs.append(pl.BlockSpec((1, tn), lambda i, j, k: (0, j)))
    if residual is not None:
        args.append(residual)
        in_specs.append(pl.BlockSpec((tm, tn), lambda i, j, k: (i, j)))

    kernel = functools.partial(
        _linear_kernel, has_ln=ln is not None, eps=eps,
        has_bias=bias is not None, activation=activation,
        has_residual=residual is not None)

    return pl.pallas_call(
        kernel,
        out_shape=jax.ShapeDtypeStruct((M, N), out_dtype),
        grid=(M // tm, N // tn, K // tk),
        in_specs=in_specs,
        out_specs=pl.BlockSpec((tm, tn), lambda i, j, k: (i, j)),
        scratch_shapes=[pltpu.VMEM((tm, tn), jnp.float32)],
        compiler_params=pltpu.CompilerParams(
            dimension_semantics=("parallel", "parallel", "arbitrary"),
            vmem_limit_bytes=_VMEM_LIMIT),
    )(*args)


# --------- attention + output projection + residual (one pallas_call) --------
def _attn_proj_kernel(qkv_ref, cos_ref, sin_ref, w_ref, b_ref, res_ref, o_ref, *,
                      n_head, n_query_groups, head_size, rope_n_elem, scale, t_q):
    T = qkv_ref.shape[1]
    hs, nr = head_size, rope_n_elem
    half = nr // 2
    G = n_query_groups
    q_per_kv = n_head // G
    total = q_per_kv + 2
    H = n_head
    C = H * hs
    n_q_tiles = T // t_q

    qkv = qkv_ref[0].astype(jnp.float32)        # (T, (H + 2G) * hs)

    # Gather per-head Q and per-group K/V as 2-D lane slices, then stack along a
    # new leading head axis so scores / PV run as ONE batched dot per term
    # (instead of 2-3 tiny MXU pushes per head).
    q_list, k_list, v_list = [], [], []
    for g in range(G):
        base = g * total * hs
        k2d = qkv[:, base + q_per_kv * hs: base + (q_per_kv + 1) * hs]
        v2d = qkv[:, base + (q_per_kv + 1) * hs: base + (q_per_kv + 2) * hs]
        for i in range(q_per_kv):                # k/v shared across the group (GQA)
            q_list.append(qkv[:, base + i * hs: base + (i + 1) * hs])
            k_list.append(k2d)
            v_list.append(v2d)
    q = jnp.stack(q_list, axis=0)                # (H, T, hs)
    k = jnp.stack(k_list, axis=0)                # (H, T, hs)
    v = jnp.stack(v_list, axis=0)                # (H, T, hs)

    cos = cos_ref[...].astype(jnp.float32)       # (T, nr)
    sin = sin_ref[...].astype(jnp.float32)

    # Query-tile rows for this grid step (second grid axis keeps both v7x
    # TensorCores busy and bounds per-step VMEM at long T).
    if n_q_tiles == 1:
        row0 = 0
        q_t, cos_q, sin_q = q, cos, sin
    else:
        row0 = pl.multiple_of(pl.program_id(1) * t_q, t_q)
        q_t = lax.dynamic_slice_in_dim(q, row0, t_q, axis=1)
        cos_q = lax.dynamic_slice_in_dim(cos, row0, t_q, axis=0)
        sin_q = lax.dynamic_slice_in_dim(sin, row0, t_q, axis=0)

    def rope_halves(x, c, s):
        # apply_rope(): roped = [x1*c1 - x2*s1, x2*c2 + x1*s2]; halves kept
        # separate so rotate-half needs no lane concat and the score is simply
        # qr1·kr1ᵀ + qr2·kr2ᵀ.  cos/sin broadcast across the head axis.
        x1, x2 = x[..., :half], x[..., half:]
        c1, c2 = c[None, :, :half], c[None, :, half:]
        s1, s2 = s[None, :, :half], s[None, :, half:]
        return x1 * c1 - x2 * s1, x2 * c2 + x1 * s2

    qr1, qr2 = rope_halves(q_t[..., :nr], cos_q, sin_q)    # (H, t_q, half)
    kr1, kr2 = rope_halves(k[..., :nr], cos, sin)          # (H, T, half)

    def bdot(a, b):      # (H, m, d) x (H, n, d) -> (H, m, n), f32 accumulation
        return jnp.einsum('hmd,hnd->hmn', a.astype(_MXU_DTYPE),
                          b.astype(_MXU_DTYPE),
                          preferred_element_type=jnp.float32)

    s = bdot(qr1, kr1) + bdot(qr2, kr2)
    if nr < hs:                                  # un-roped tail (rotary_pct < 1)
        s = s + bdot(q_t[..., nr:], k[..., nr:])
    s = s * scale

    row = row0 + lax.broadcasted_iota(jnp.int32, (t_q, T), 0)
    col = lax.broadcasted_iota(jnp.int32, (t_q, T), 1)
    s = jnp.where((col <= row)[None, :, :], s, _NEG_INF)   # causal, f32, pre-exp

    m = jnp.max(s, axis=-1, keepdims=True)
    p = jnp.exp(s - m)
    p = p / jnp.sum(p, axis=-1, keepdims=True)             # exact softmax (torch parity)

    y = jnp.einsum('hmn,hnd->hmd', p.astype(_MXU_DTYPE), v.astype(_MXU_DTYPE),
                   preferred_element_type=jnp.float32)     # (H, t_q, hs)
    y2d = jnp.concatenate([y[h] for h in range(H)], axis=-1)   # (t_q, C)

    # Fused output projection + bias + residual: ONE lane-dense (t_q, C) store.
    out = jnp.dot(y2d.astype(_MXU_DTYPE), w_ref[...].astype(_MXU_DTYPE),
                  preferred_element_type=jnp.float32)
    out = out + b_ref[...].astype(jnp.float32) + res_ref[0].astype(jnp.float32)
    o_ref[0] = out.astype(o_ref.dtype)


def attention_proj(qkv, cos, sin, w_proj_t, b_proj, x_res, cfg):
    """(attention over packed QKV) @ W_proj + b_proj + x_res, one pallas_call."""
    B, T, qkv_dim = qkv.shape
    C = cfg.n_head * cfg.head_size               # == n_embd
    if b_proj is None:
        b_proj = jnp.zeros((C,), jnp.float32)
    tq = _pick_tile(T, 256, 8)                   # query tile (second grid axis)
    n_q = T // tq
    kernel = functools.partial(
        _attn_proj_kernel, n_head=cfg.n_head, n_query_groups=cfg.n_query_groups,
        head_size=cfg.head_size, rope_n_elem=cfg.rope_n_elem,
        scale=1.0 / math.sqrt(cfg.head_size), t_q=tq)
    return pl.pallas_call(
        kernel,
        out_shape=jax.ShapeDtypeStruct((B, T, C), x_res.dtype),
        grid=(B, n_q),
        in_specs=[
            pl.BlockSpec((1, T, qkv_dim), lambda b, qi: (b, 0, 0)),
            pl.BlockSpec((T, cfg.rope_n_elem), lambda b, qi: (0, 0)),
            pl.BlockSpec((T, cfg.rope_n_elem), lambda b, qi: (0, 0)),
            pl.BlockSpec((C, C), lambda b, qi: (0, 0)),
            pl.BlockSpec((1, C), lambda b, qi: (0, 0)),
            pl.BlockSpec((1, tq, C), lambda b, qi: (b, qi, 0)),
        ],
        out_specs=pl.BlockSpec((1, tq, C), lambda b, qi: (b, qi, 0)),
        compiler_params=pltpu.CompilerParams(
            dimension_semantics=("parallel", "parallel"),
            vmem_limit_bytes=_VMEM_LIMIT),
    )(qkv, cos, sin, w_proj_t, b_proj.reshape(1, C), x_res)


# ----------------------------- model glue ------------------------------------
def build_rope_cache(seq_len, n_elem, base=10000, condense_ratio=1):
    theta = 1.0 / (base ** (jnp.arange(0, n_elem, 2, dtype=jnp.float32) / n_elem))
    seq_idx = jnp.arange(seq_len, dtype=jnp.float32) / condense_ratio
    idx_theta = jnp.outer(seq_idx, theta)
    idx_theta = jnp.concatenate([idx_theta, idx_theta], axis=-1)   # .repeat(1, 2)
    return jnp.cos(idx_theta), jnp.sin(idx_theta)


def block_forward(p, x, cos, sin, cfg):
    B, T, C = x.shape
    x2d = x.reshape(B * T, C)

    # (1) LN1 fused into the packed QKV projection.
    qkv = fused_linear(x2d, p["attn_w_t"], p["attn_b"],
                       ln=(p["ln1_w"], p["ln1_b"]), eps=cfg.norm_eps)
    # (2) attention + output projection + bias + residual(x) in one kernel.
    h_x = attention_proj(qkv.reshape(B, T, -1), cos, sin,
                         p["proj_w_t"], p["proj_b"], x, cfg)       # == h + x
    h_x2d = h_x.reshape(B * T, C)

    if cfg.parallel_residual:
        ln2 = ((p["ln1_w"], p["ln1_b"]) if cfg.shared_attention_norm
               else (p["ln2_w"], p["ln2_b"]))
        # (3) LN2 + fc + bias + exact gelu.   (4) mlp proj + bias + residual.
        fc = fused_linear(x2d, p["fc_w_t"], p["fc_b"], ln=ln2,
                          eps=cfg.norm_eps, activation="gelu")
        out = fused_linear(fc, p["mlp_proj_w_t"], p["mlp_proj_b"], residual=h_x2d)
    else:
        fc = fused_linear(h_x2d, p["fc_w_t"], p["fc_b"],
                          ln=(p["ln2_w"], p["ln2_b"]),
                          eps=cfg.norm_eps, activation="gelu")
        out = fused_linear(fc, p["mlp_proj_w_t"], p["mlp_proj_b"], residual=h_x2d)
    return out.reshape(B, T, C)


def gpt_forward(params, idx, cos, sin, cfg):
    B, T = idx.shape
    x = jnp.take(params["wte"], idx, axis=0)     # (B, T, C) embedding lookup
    for layer in params["h"]:
        x = block_forward(layer, x, cos, sin, cfg)
    x2d = x.reshape(B * T, cfg.n_embd)
    # ln_f fused into lm_head (single column tile at this vocab); no-bias path.
    logits = fused_linear(x2d, params["lm_head_w_t"], None,
                          ln=(params["ln_f_w"], params["ln_f_b"]),
                          eps=cfg.norm_eps)
    return logits.reshape(B, T, cfg.padded_vocab_size)


# ------------------------- parameter construction ----------------------------
def init_params(key, cfg):
    keys = iter(jax.random.split(key, 4 + 4 * cfg.n_layer))

    def nrm(shape):
        # torch init normal(0, 0.02); weights stored bf16 in HBM (halves DMA).
        return (0.02 * jax.random.normal(next(keys), shape,
                                         dtype=jnp.float32)).astype(_W_DTYPE)

    qkv_out = (cfg.n_head + 2 * cfg.n_query_groups) * cfg.head_size
    params = {
        "wte": 0.02 * jax.random.normal(next(keys),
                                        (cfg.padded_vocab_size, cfg.n_embd),
                                        dtype=jnp.float32),
        "ln_f_w": jnp.ones((cfg.n_embd,), jnp.float32),
        "ln_f_b": jnp.zeros((cfg.n_embd,), jnp.float32),
        # torch Linear weight is (out, in); kernels take it pre-transposed (in, out)
        "lm_head_w_t": nrm((cfg.padded_vocab_size, cfg.n_embd)).T,
        "h": [],
    }
    for _ in range(cfg.n_layer):
        params["h"].append({
            "ln1_w": jnp.ones((cfg.n_embd,), jnp.float32),
            "ln1_b": jnp.zeros((cfg.n_embd,), jnp.float32),
            "ln2_w": jnp.ones((cfg.n_embd,), jnp.float32),
            "ln2_b": jnp.zeros((cfg.n_embd,), jnp.float32),
            "attn_w_t": nrm((qkv_out, cfg.n_embd)).T,
            "attn_b": jnp.zeros((qkv_out,), jnp.float32),
            "proj_w_t": nrm((cfg.n_embd, cfg.n_embd)).T,
            "proj_b": jnp.zeros((cfg.n_embd,), jnp.float32),
            "fc_w_t": nrm((cfg.intermediate_size, cfg.n_embd)).T,
            "fc_b": jnp.zeros((cfg.intermediate_size,), jnp.float32),
            "mlp_proj_w_t": nrm((cfg.n_embd, cfg.intermediate_size)).T,
            "mlp_proj_b": jnp.zeros((cfg.n_embd,), jnp.float32),
        })
    return params


# --------------------------------- main ---------------------------------------
if __name__ == "__main__":
    cfg = Config()
    key = jax.random.PRNGKey(0)
    pkey, ikey = jax.random.split(key)
    params = init_params(pkey, cfg)

    B, T = 2, 8
    idx = jax.random.randint(ikey, (B, T), 0, cfg.padded_vocab_size, dtype=jnp.int32)
    # RoPE cache precomputed once (hoisted out of the per-forward path).
    cos, sin = build_rope_cache(T, cfg.rope_n_elem, cfg.rope_base,
                                cfg.rope_condense_ratio)

    forward = jax.jit(functools.partial(gpt_forward, cfg=cfg))
    logits = jax.block_until_ready(forward(params, idx, cos, sin))
    assert logits.shape == (B, T, cfg.padded_vocab_size)
    assert bool(jnp.all(jnp.isfinite(logits)))
    print("KERNEL_OK")
</pallas_src>

<mosaic_0001>
module attributes {stable_mosaic.version = 11 : i64} {
  func.func @_linear_kernel(%arg0: i32, %arg1: i32, %arg2: i32, %arg3: memref<16x32xf32, #tpu.memory_space<vmem>>, %arg4: memref<1x32xf32, #tpu.memory_space<vmem>>, %arg5: memref<1x32xf32, #tpu.memory_space<vmem>>, %arg6: memref<32x96xbf16, #tpu.memory_space<vmem>>, %arg7: memref<1x96xf32, #tpu.memory_space<vmem>>, %arg8: memref<16x96xf32, #tpu.memory_space<vmem>>, %arg9: memref<16x96xf32, #tpu.memory_space<vmem>>) attributes {dimension_semantics = [#tpu.dimension_semantics<parallel>, #tpu.dimension_semantics<parallel>, #tpu.dimension_semantics<arbitrary>], iteration_bounds = array<i64: 1, 1, 1>, scalar_prefetch = 0 : i64, scratch_operands = 1 : i64, tpu.core_type = #tpu.core_type<tc>, window_params = [{transform_indices = @transform_0, window_bounds = array<i64: 16, 32>}, {pipeline_mode = #tpu.pipeline_mode<synchronous>, transform_indices = @transform_1, window_bounds = array<i64: 1, 32>}, {pipeline_mode = #tpu.pipeline_mode<synchronous>, transform_indices = @transform_2, window_bounds = array<i64: 1, 32>}, {transform_indices = @transform_3, window_bounds = array<i64: 32, 96>}, {transform_indices = @transform_4, window_bounds = array<i64: 1, 96>}, {transform_indices = @transform_5, window_bounds = array<i64: 16, 96>}]} {
    %c0_i32 = arith.constant 0 : i32
    %0 = arith.cmpi eq, %arg2, %c0_i32 : i32
    %1 = arith.extui %0 : i1 to i32
    %c0_i32_0 = arith.constant 0 : i32
    %2 = arith.cmpi ne, %1, %c0_i32_0 : i32
    scf.if %2 {
      %cst_19 = arith.constant 0.000000e+00 : f32
      %39 = vector.broadcast %cst_19 : f32 to vector<16x96xf32>
      %c0_20 = arith.constant 0 : index
      %c0_21 = arith.constant 0 : index
      %40 = vector.load %arg9[%c0_20, %c0_21] : memref<16x96xf32, #tpu.memory_space<vmem>>, vector<16x96xf32>
      tpu.vector_store %arg9[%c0_20, %c0_21], %39 {strides = array<i32>} : memref<16x96xf32, #tpu.memory_space<vmem>>, vector<16x96xf32>,
    } else {
    }
    %c0 = arith.constant 0 : index
    %c0_1 = arith.constant 0 : index
    %3 = vector.load %arg3[%c0, %c0_1] : memref<16x32xf32, #tpu.memory_space<vmem>>, vector<16x32xf32>
    %cst = arith.constant dense<0.000000e+00> : vector<16xf32>
    %4 = vector.multi_reduction <add>, %3, %cst [1] : vector<16x32xf32> to vector<16xf32>
    %5 = vector.shape_cast %4 : vector<16xf32> to vector<16x1xf32>
    %cst_2 = arith.constant 3.200000e+01 : f32
    %6 = vector.broadcast %cst_2 : f32 to vector<16x1xf32>
    %7 = arith.divf %5, %6 : vector<16x1xf32>
    %8 = vector.broadcast %7 : vector<16x1xf32> to vector<16x32xf32>
    %9 = arith.subf %3, %8 : vector<16x32xf32>
    %10 = vector.broadcast %7 : vector<16x1xf32> to vector<16x32xf32>
    %11 = arith.subf %3, %10 : vector<16x32xf32>
    %12 = arith.mulf %9, %11 : vector<16x32xf32>
    %cst_3 = arith.constant dense<0.000000e+00> : vector<16xf32>
    %13 = vector.multi_reduction <add>, %12, %cst_3 [1] : vector<16x32xf32> to vector<16xf32>
    %14 = vector.shape_cast %13 : vector<16xf32> to vector<16x1xf32>
    %cst_4 = arith.constant 3.200000e+01 : f32
    %15 = vector.broadcast %cst_4 : f32 to vector<16x1xf32>
    %16 = arith.divf %14, %15 : vector<16x1xf32>
    %17 = vector.broadcast %7 : vector<16x1xf32> to vector<16x32xf32>
    %18 = arith.subf %3, %17 : vector<16x32xf32>
    %cst_5 = arith.constant 9.99999974E-6 : f32
    %19 = vector.broadcast %cst_5 : f32 to vector<16x1xf32>
    %20 = arith.addf %16, %19 : vector<16x1xf32>
    %21 = math.rsqrt %20 : vector<16x1xf32>
    %22 = vector.broadcast %21 : vector<16x1xf32> to vector<16x32xf32>
    %23 = arith.mulf %18, %22 : vector<16x32xf32>
    %c0_6 = arith.constant 0 : index
    %c0_7 = arith.constant 0 : index
    %24 = vector.load %arg4[%c0_6, %c0_7] : memref<1x32xf32, #tpu.memory_space<vmem>>, vector<1x32xf32>
    %25 = vector.broadcast %24 : vector<1x32xf32> to vector<16x32xf32>
    %26 = arith.mulf %23, %25 : vector<16x32xf32>
    %c0_8 = arith.constant 0 : index
    %c0_9 = arith.constant 0 : index
    %27 = vector.load %arg5[%c0_8, %c0_9] : memref<1x32xf32, #tpu.memory_space<vmem>>, vector<1x32xf32>
    %28 = vector.broadcast %27 : vector<1x32xf32> to vector<16x32xf32>
    %29 = arith.addf %26, %28 : vector<16x32xf32>
    %c0_10 = arith.constant 0 : index
    %c0_11 = arith.constant 0 : index
    %30 = vector.load %arg9[%c0_10, %c0_11] : memref<16x96xf32, #tpu.memory_space<vmem>>, vector<16x96xf32>
    %31 = arith.truncf %29 : vector<16x32xf32> to vector<16x32xbf16>
    %c0_12 = arith.constant 0 : index
    %c0_13 = arith.constant 0 : index
    %32 = vector.load %arg6[%c0_12, %c0_13] : memref<32x96xbf16, #tpu.memory_space<vmem>>, vector<32x96xbf16>
    %cst_14 = arith.constant dense<0.000000e+00> : vector<16x96xf32>
    %33 = tpu.matmul %31, %32, %cst_14 {dimension_numbers = #tpu.dot_dimension_numbers<[1], [0], [0], [1], [0, 0, 1, 1], [], []>} : vector<16x32xbf16>, vector<32x96xbf16>, vector<16x96xf32> -> vector<16x96xf32>
    %34 = arith.addf %30, %33 : vector<16x96xf32>
    %c0_15 = arith.constant 0 : index
    %c0_16 = arith.constant 0 : index
    %35 = vector.load %arg9[%c0_15, %c0_16] : memref<16x96xf32, #tpu.memory_space<vmem>>, vector<16x96xf32>
    tpu.vector_store %arg9[%c0_15, %c0_16], %34 {strides = array<i32>} : memref<16x96xf32, #tpu.memory_space<vmem>>, vector<16x96xf32>,
    %c0_i32_17 = arith.constant 0 : i32
    %36 = arith.cmpi eq, %arg2, %c0_i32_17 : i32
    %37 = arith.extui %36 : i1 to i32
    %c0_i32_18 = arith.constant 0 : i32
    %38 = arith.cmpi ne, %37, %c0_i32_18 : i32
    scf.if %38 {
      %c0_19 = arith.constant 0 : index
      %c0_20 = arith.constant 0 : index
      %39 = vector.load %arg9[%c0_19, %c0_20] : memref<16x96xf32, #tpu.memory_space<vmem>>, vector<16x96xf32>
      %c0_21 = arith.constant 0 : index
      %c0_22 = arith.constant 0 : index
      %40 = vector.load %arg7[%c0_21, %c0_22] : memref<1x96xf32, #tpu.memory_space<vmem>>, vector<1x96xf32>
      %41 = vector.broadcast %40 : vector<1x96xf32> to vector<16x96xf32>
      %42 = arith.addf %39, %41 : vector<16x96xf32>
      %c0_23 = arith.constant 0 : index
      %c0_24 = arith.constant 0 : index
      %43 = vector.load %arg8[%c0_23, %c0_24] : memref<16x96xf32, #tpu.memory_space<vmem>>, vector<16x96xf32>
      tpu.vector_store %arg8[%c0_23, %c0_24], %42 {strides = array<i32>} : memref<16x96xf32, #tpu.memory_space<vmem>>, vector<16x96xf32>,
    } else {
    }
    return
  }
  func.func @transform_0(%arg0: i32, %arg1: i32, %arg2: i32) -> (i32, i32) {
    %c0_i32 = arith.constant 0 : i32
    return %arg0, %arg2 : i32, i32
  }
  func.func @transform_1(%arg0: i32, %arg1: i32, %arg2: i32) -> (i32, i32) {
    %c0_i32 = arith.constant 0 : i32
    %c0_i32_0 = arith.constant 0 : i32
    %c0_i32_1 = arith.constant 0 : i32
    return %c0_i32, %c0_i32_0 : i32, i32
  }
  func.func @transform_2(%arg0: i32, %arg1: i32, %arg2: i32) -> (i32, i32) {
    %c0_i32 = arith.constant 0 : i32
    %c0_i32_0 = arith.constant 0 : i32
    %c0_i32_1 = arith.constant 0 : i32
    return %c0_i32, %c0_i32_0 : i32, i32
  }
  func.func @transform_3(%arg0: i32, %arg1: i32, %arg2: i32) -> (i32, i32) {
    %c0_i32 = arith.constant 0 : i32
    return %arg2, %arg1 : i32, i32
  }
  func.func @transform_4(%arg0: i32, %arg1: i32, %arg2: i32) -> (i32, i32) {
    %c0_i32 = arith.constant 0 : i32
    %c0_i32_0 = arith.constant 0 : i32
    return %c0_i32, %arg1 : i32, i32
  }
  func.func @transform_5(%arg0: i32, %arg1: i32, %arg2: i32) -> (i32, i32) {
    %c0_i32 = arith.constant 0 : i32
    return %arg0, %arg1 : i32, i32
  }
}

module attributes {stable_mosaic.version = 11 : i64} {
  func.func @_linear_kernel(%arg0: i32, %arg1: i32, %arg2: i32, %arg3: memref<16x32xf32, #tpu.memory_space<vmem>>, %arg4: memref<1x32xf32, #tpu.memory_space<vmem>>, %arg5: memref<1x32xf32, #tpu.memory_space<vmem>>, %arg6: memref<32x128xbf16, #tpu.memory_space<vmem>>, %arg7: memref<1x128xf32, #tpu.memory_space<vmem>>, %arg8: memref<16x128xf32, #tpu.memory_space<vmem>>, %arg9: memref<16x128xf32, #tpu.memory_space<vmem>>) attributes {dimension_semantics = [#tpu.dimension_semantics<parallel>, #tpu.dimension_semantics<parallel>, #tpu.dimension_semantics<arbitrary>], iteration_bounds = array<i64: 1, 1, 1>, scalar_prefetch = 0 : i64, scratch_operands = 1 : i64, tpu.core_type = #tpu.core_type<tc>, window_params = [{transform_indices = @transform_0, window_bounds = array<i64: 16, 32>}, {pipeline_mode = #tpu.pipeline_mode<synchronous>, transform_indices = @transform_1, window_bounds = array<i64: 1, 32>}, {pipeline_mode = #tpu.pipeline_mode<synchronous>, transform_indices = @transform_2, window_bounds = array<i64: 1, 32>}, {transform_indices = @transform_3, window_bounds = array<i64: 32, 128>}, {transform_indices = @transform_4, window_bounds = array<i64: 1, 128>}, {transform_indices = @transform_5, window_bounds = array<i64: 16, 128>}]} {
    %c0_i32 = arith.constant 0 : i32
    %0 = arith.cmpi eq, %arg2, %c0_i32 : i32
    %1 = arith.extui %0 : i1 to i32
    %c0_i32_0 = arith.constant 0 : i32
    %2 = arith.cmpi ne, %1, %c0_i32_0 : i32
    scf.if %2 {
      %cst_19 = arith.constant 0.000000e+00 : f32
      %39 = vector.broadcast %cst_19 : f32 to vector<16x128xf32>
      %c0_20 = arith.constant 0 : index
      %c0_21 = arith.constant 0 : index
      %40 = vector.load %arg9[%c0_20, %c0_21] : memref<16x128xf32, #tpu.memory_space<vmem>>, vector<16x128xf32>
      tpu.vector_store %arg9[%c0_20, %c0_21], %39 {strides = array<i32>} : memref<16x128xf32, #tpu.memory_space<vmem>>, vector<16x128xf32>,
    } else {
    }
    %c0 = arith.constant 0 : index
    %c0_1 = arith.constant 0 : index
    %3 = vector.load %arg3[%c0, %c0_1] : memref<16x32xf32, #tpu.memory_space<vmem>>, vector<16x32xf32>
    %cst = arith.constant dense<0.000000e+00> : vector<16xf32>
    %4 = vector.multi_reduction <add>, %3, %cst [1] : vector<16x32xf32> to vector<16xf32>
    %5 = vector.shape_cast %4 : vector<16xf32> to vector<16x1xf32>
    %cst_2 = arith.constant 3.200000e+01 : f32
    %6 = vector.broadcast %cst_2 : f32 to vector<16x1xf32>
    %7 = arith.divf %5, %6 : vector<16x1xf32>
    %8 = vector.broadcast %7 : vector<16x1xf32> to vector<16x32xf32>
    %9 = arith.subf %3, %8 : vector<16x32xf32>
    %10 = vector.broadcast %7 : vector<16x1xf32> to vector<16x32xf32>
    %11 = arith.subf %3, %10 : vector<16x32xf32>
    %12 = arith.mulf %9, %11 : vector<16x32xf32>
    %cst_3 = arith.constant dense<0.000000e+00> : vector<16xf32>
    %13 = vector.multi_reduction <add>, %12, %cst_3 [1] : vector<16x32xf32> to vector<16xf32>
    %14 = vector.shape_cast %13 : vector<16xf32> to vector<16x1xf32>
    %cst_4 = arith.constant 3.200000e+01 : f32
    %15 = vector.broadcast %cst_4 : f32 to vector<16x1xf32>
    %16 = arith.divf %14, %15 : vector<16x1xf32>
    %17 = vector.broadcast %7 : vector<16x1xf32> to vector<16x32xf32>
    %18 = arith.subf %3, %17 : vector<16x32xf32>
    %cst_5 = arith.constant 9.99999974E-6 : f32
    %19 = vector.broadcast %cst_5 : f32 to vector<16x1xf32>
    %20 = arith.addf %16, %19 : vector<16x1xf32>
    %21 = math.rsqrt %20 : vector<16x1xf32>
    %22 = vector.broadcast %21 : vector<16x1xf32> to vector<16x32xf32>
    %23 = arith.mulf %18, %22 : vector<16x32xf32>
    %c0_6 = arith.constant 0 : index
    %c0_7 = arith.constant 0 : index
    %24 = vector.load %arg4[%c0_6, %c0_7] : memref<1x32xf32, #tpu.memory_space<vmem>>, vector<1x32xf32>
    %25 = vector.broadcast %24 : vector<1x32xf32> to vector<16x32xf32>
    %26 = arith.mulf %23, %25 : vector<16x32xf32>
    %c0_8 = arith.constant 0 : index
    %c0_9 = arith.constant 0 : index
    %27 = vector.load %arg5[%c0_8, %c0_9] : memref<1x32xf32, #tpu.memory_space<vmem>>, vector<1x32xf32>
    %28 = vector.broadcast %27 : vector<1x32xf32> to vector<16x32xf32>
    %29 = arith.addf %26, %28 : vector<16x32xf32>
    %c0_10 = arith.constant 0 : index
    %c0_11 = arith.constant 0 : index
    %30 = vector.load %arg9[%c0_10, %c0_11] : memref<16x128xf32, #tpu.memory_space<vmem>>, vector<16x128xf32>
    %31 = arith.truncf %29 : vector<16x32xf32> to vector<16x32xbf16>
    %c0_12 = arith.constant 0 : index
    %c0_13 = arith.constant 0 : index
    %32 = vector.load %arg6[%c0_12, %c0_13] : memref<32x128xbf16, #tpu.memory_space<vmem>>, vector<32x128xbf16>
    %cst_14 = arith.constant dense<0.000000e+00> : vector<16x128xf32>
    %33 = tpu.matmul %31, %32, %cst_14 {dimension_numbers = #tpu.dot_dimension_numbers<[1], [0], [0], [1], [0, 0, 1, 1], [], []>} : vector<16x32xbf16>, vector<32x128xbf16>, vector<16x128xf32> -> vector<16x128xf32>
    %34 = arith.addf %30, %33 : vector<16x128xf32>
    %c0_15 = arith.constant 0 : index
    %c0_16 = arith.constant 0 : index
    %35 = vector.load %arg9[%c0_15, %c0_16] : memref<16x128xf32, #tpu.memory_space<vmem>>, vector<16x128xf32>
    tpu.vector_store %arg9[%c0_15, %c0_16], %34 {strides = array<i32>} : memref<16x128xf32, #tpu.memory_space<vmem>>, vector<16x128xf32>,
    %c0_i32_17 = arith.constant 0 : i32
    %36 = arith.cmpi eq, %arg2, %c0_i32_17 : i32
    %37 = arith.extui %36 : i1 to i32
    %c0_i32_18 = arith.constant 0 : i32
    %38 = arith.cmpi ne, %37, %c0_i32_18 : i32
    scf.if %38 {
      %c0_19 = arith.constant 0 : index
      %c0_20 = arith.constant 0 : index
      %39 = vector.load %arg9[%c0_19, %c0_20] : memref<16x128xf32, #tpu.memory_space<vmem>>, vector<16x128xf32>
      %c0_21 = arith.constant 0 : index
      %c0_22 = arith.constant 0 : index
      %40 = vector.load %arg7[%c0_21, %c0_22] : memref<1x128xf32, #tpu.memory_space<vmem>>, vector<1x128xf32>
      %41 = vector.broadcast %40 : vector<1x128xf32> to vector<16x128xf32>
      %42 = arith.addf %39, %41 : vector<16x128xf32>
      %cst_23 = arith.constant 5.000000e-01 : f32
      %43 = vector.broadcast %cst_23 : f32 to vector<16x128xf32>
      %44 = arith.mulf %43, %42 : vector<16x128xf32>
      %cst_24 = arith.constant 0.707106769 : f32
      %45 = vector.broadcast %cst_24 : f32 to vector<16x128xf32>
      %46 = arith.mulf %42, %45 : vector<16x128xf32>
      %47 = math.erf %46 : vector<16x128xf32>
      %cst_25 = arith.constant 1.000000e+00 : f32
      %48 = vector.broadcast %cst_25 : f32 to vector<16x128xf32>
      %49 = arith.addf %48, %47 : vector<16x128xf32>
      %50 = arith.mulf %44, %49 : vector<16x128xf32>
      %c0_26 = arith.constant 0 : index
      %c0_27 = arith.constant 0 : index
      %51 = vector.load %arg8[%c0_26, %c0_27] : memref<16x128xf32, #tpu.memory_space<vmem>>, vector<16x128xf32>
      tpu.vector_store %arg8[%c0_26, %c0_27], %50 {strides = array<i32>} : memref<16x128xf32, #tpu.memory_space<vmem>>, vector<16x128xf32>,
    } else {
    }
    return
  }
  func.func @transform_0(%arg0: i32, %arg1: i32, %arg2: i32) -> (i32, i32) {
    %c0_i32 = arith.constant 0 : i32
    return %arg0, %arg2 : i32, i32
  }
  func.func @transform_1(%arg0: i32, %arg1: i32, %arg2: i32) -> (i32, i32) {
    %c0_i32 = arith.constant 0 : i32
    %c0_i32_0 = arith.constant 0 : i32
    %c0_i32_1 = arith.constant 0 : i32
    return %c0_i32, %c0_i32_0 : i32, i32
  }
  func.func @transform_2(%arg0: i32, %arg1: i32, %arg2: i32) -> (i32, i32) {
    %c0_i32 = arith.constant 0 : i32
    %c0_i32_0 = arith.constant 0 : i32
    %c0_i32_1 = arith.constant 0 : i32
    return %c0_i32, %c0_i32_0 : i32, i32
  }
  func.func @transform_3(%arg0: i32, %arg1: i32, %arg2: i32) -> (i32, i32) {
    %c0_i32 = arith.constant 0 : i32
    return %arg2, %arg1 : i32, i32
  }
  func.func @transform_4(%arg0: i32, %arg1: i32, %arg2: i32) -> (i32, i32) {
    %c0_i32 = arith.constant 0 : i32
    %c0_i32_0 = arith.constant 0 : i32
    return %c0_i32, %arg1 : i32, i32
  }
  func.func @transform_5(%arg0: i32, %arg1: i32, %arg2: i32) -> (i32, i32) {
    %c0_i32 = arith.constant 0 : i32
    return %arg0, %arg1 : i32, i32
  }
}

module attributes {stable_mosaic.version = 11 : i64} {
  func.func @_attn_proj_kernel(%arg0: i32, %arg1: i32, %arg2: memref<1x8x96xf32, #tpu.memory_space<vmem>>, %arg3: memref<8x8xf32, #tpu.memory_space<vmem>>, %arg4: memref<8x8xf32, #tpu.memory_space<vmem>>, %arg5: memref<32x32xbf16, #tpu.memory_space<vmem>>, %arg6: memref<1x32xf32, #tpu.memory_space<vmem>>, %arg7: memref<1x8x32xf32, #tpu.memory_space<vmem>>, %arg8: memref<1x8x32xf32, #tpu.memory_space<vmem>>) attributes {dimension_semantics = [#tpu.dimension_semantics<parallel>, #tpu.dimension_semantics<parallel>], iteration_bounds = array<i64: 2, 1>, scalar_prefetch = 0 : i64, scratch_operands = 0 : i64, tpu.core_type = #tpu.core_type<tc>, window_params = [{transform_indices = @transform_0, window_bounds = array<i64: 1, 8, 96>}, {pipeline_mode = #tpu.pipeline_mode<synchronous>, transform_indices = @transform_1, window_bounds = array<i64: 8, 8>}, {pipeline_mode = #tpu.pipeline_mode<synchronous>, transform_indices = @transform_2, window_bounds = array<i64: 8, 8>}, {pipeline_mode = #tpu.pipeline_mode<synchronous>, transform_indices = @transform_3, window_bounds = array<i64: 32, 32>}, {pipeline_mode = #tpu.pipeline_mode<synchronous>, transform_indices = @transform_4, window_bounds = array<i64: 1, 32>}, {transform_indices = @transform_5, window_bounds = array<i64: 1, 8, 32>}, {transform_indices = @transform_6, window_bounds = array<i64: 1, 8, 32>}]} {
    %c0 = arith.constant 0 : index
    %c0_0 = arith.constant 0 : index
    %c0_1 = arith.constant 0 : index
    %0 = vector.load %arg2[%c0, %c0_0, %c0_1] : memref<1x8x96xf32, #tpu.memory_space<vmem>>, vector<1x8x96xf32>
    %1 = vector.shape_cast %0 : vector<1x8x96xf32> to vector<8x96xf32>
    %2 = vector.extract_strided_slice %1 {offsets = [0, 8], sizes = [8, 8], strides = [1, 1]} : vector<8x96xf32> to vector<8x8xf32>
    %3 = vector.extract_strided_slice %1 {offsets = [0, 16], sizes = [8, 8], strides = [1, 1]} : vector<8x96xf32> to vector<8x8xf32>
    %4 = vector.extract_strided_slice %1 {offsets = [0, 0], sizes = [8, 8], strides = [1, 1]} : vector<8x96xf32> to vector<8x8xf32>
    %5 = vector.extract_strided_slice %1 {offsets = [0, 32], sizes = [8, 8], strides = [1, 1]} : vector<8x96xf32> to vector<8x8xf32>
    %6 = vector.extract_strided_slice %1 {offsets = [0, 40], sizes = [8, 8], strides = [1, 1]} : vector<8x96xf32> to vector<8x8xf32>
    %7 = vector.extract_strided_slice %1 {offsets = [0, 24], sizes = [8, 8], strides = [1, 1]} : vector<8x96xf32> to vector<8x8xf32>
    %8 = vector.extract_strided_slice %1 {offsets = [0, 56], sizes = [8, 8], strides = [1, 1]} : vector<8x96xf32> to vector<8x8xf32>
    %9 = vector.extract_strided_slice %1 {offsets = [0, 64], sizes = [8, 8], strides = [1, 1]} : vector<8x96xf32> to vector<8x8xf32>
    %10 = vector.extract_strided_slice %1 {offsets = [0, 48], sizes = [8, 8], strides = [1, 1]} : vector<8x96xf32> to vector<8x8xf32>
    %11 = vector.extract_strided_slice %1 {offsets = [0, 80], sizes = [8, 8], strides = [1, 1]} : vector<8x96xf32> to vector<8x8xf32>
    %12 = vector.extract_strided_slice %1 {offsets = [0, 88], sizes = [8, 8], strides = [1, 1]} : vector<8x96xf32> to vector<8x8xf32>
    %13 = vector.extract_strided_slice %1 {offsets = [0, 72], sizes = [8, 8], strides = [1, 1]} : vector<8x96xf32> to vector<8x8xf32>
    %14 = vector.shape_cast %4 : vector<8x8xf32> to vector<1x8x8xf32>
    %15 = vector.shape_cast %7 : vector<8x8xf32> to vector<1x8x8xf32>
    %16 = vector.shape_cast %10 : vector<8x8xf32> to vector<1x8x8xf32>
    %17 = vector.shape_cast %13 : vector<8x8xf32> to vector<1x8x8xf32>
    %18 = tpu.concatenate %14, %15, %16, %17 in 0 : vector<1x8x8xf32>, vector<1x8x8xf32>, vector<1x8x8xf32>, vector<1x8x8xf32> -> vector<4x8x8xf32>
    %19 = vector.shape_cast %2 : vector<8x8xf32> to vector<1x8x8xf32>
    %20 = vector.shape_cast %5 : vector<8x8xf32> to vector<1x8x8xf32>
    %21 = vector.shape_cast %8 : vector<8x8xf32> to vector<1x8x8xf32>
    %22 = vector.shape_cast %11 : vector<8x8xf32> to vector<1x8x8xf32>
    %23 = tpu.concatenate %19, %20, %21, %22 in 0 : vector<1x8x8xf32>, vector<1x8x8xf32>, vector<1x8x8xf32>, vector<1x8x8xf32> -> vector<4x8x8xf32>
    %24 = vector.shape_cast %3 : vector<8x8xf32> to vector<1x8x8xf32>
    %25 = vector.shape_cast %6 : vector<8x8xf32> to vector<1x8x8xf32>
    %26 = vector.shape_cast %9 : vector<8x8xf32> to vector<1x8x8xf32>
    %27 = vector.shape_cast %12 : vector<8x8xf32> to vector<1x8x8xf32>
    %28 = tpu.concatenate %24, %25, %26, %27 in 0 : vector<1x8x8xf32>, vector<1x8x8xf32>, vector<1x8x8xf32>, vector<1x8x8xf32> -> vector<4x8x8xf32>
    %c0_2 = arith.constant 0 : index
    %c0_3 = arith.constant 0 : index
    %29 = vector.load %arg3[%c0_2, %c0_3] : memref<8x8xf32, #tpu.memory_space<vmem>>, vector<8x8xf32>
    %c0_4 = arith.constant 0 : index
    %c0_5 = arith.constant 0 : index
    %30 = vector.load %arg4[%c0_4, %c0_5] : memref<8x8xf32, #tpu.memory_space<vmem>>, vector<8x8xf32>
    %31 = vector.extract_strided_slice %18 {offsets = [0, 0, 0], sizes = [4, 8, 4], strides = [1, 1, 1]} : vector<4x8x8xf32> to vector<4x8x4xf32>
    %32 = vector.extract_strided_slice %18 {offsets = [0, 0, 4], sizes = [4, 8, 4], strides = [1, 1, 1]} : vector<4x8x8xf32> to vector<4x8x4xf32>
    %33 = vector.extract_strided_slice %29 {offsets = [0, 0], sizes = [8, 4], strides = [1, 1]} : vector<8x8xf32> to vector<8x4xf32>
    %34 = vector.shape_cast %33 : vector<8x4xf32> to vector<1x8x4xf32>
    %35 = vector.extract_strided_slice %29 {offsets = [0, 4], sizes = [8, 4], strides = [1, 1]} : vector<8x8xf32> to vector<8x4xf32>
    %36 = vector.shape_cast %35 : vector<8x4xf32> to vector<1x8x4xf32>
    %37 = vector.extract_strided_slice %30 {offsets = [0, 0], sizes = [8, 4], strides = [1, 1]} : vector<8x8xf32> to vector<8x4xf32>
    %38 = vector.shape_cast %37 : vector<8x4xf32> to vector<1x8x4xf32>
    %39 = vector.extract_strided_slice %30 {offsets = [0, 4], sizes = [8, 4], strides = [1, 1]} : vector<8x8xf32> to vector<8x4xf32>
    %40 = vector.shape_cast %39 : vector<8x4xf32> to vector<1x8x4xf32>
    %41 = vector.broadcast %34 : vector<1x8x4xf32> to vector<4x8x4xf32>
    %42 = arith.mulf %31, %41 : vector<4x8x4xf32>
    %43 = vector.broadcast %38 : vector<1x8x4xf32> to vector<4x8x4xf32>
    %44 = arith.mulf %32, %43 : vector<4x8x4xf32>
    %45 = arith.subf %42, %44 : vector<4x8x4xf32>
    %46 = vector.broadcast %36 : vector<1x8x4xf32> to vector<4x8x4xf32>
    %47 = arith.mulf %32, %46 : vector<4x8x4xf32>
    %48 = vector.broadcast %40 : vector<1x8x4xf32> to vector<4x8x4xf32>
    %49 = arith.mulf %31, %48 : vector<4x8x4xf32>
    %50 = arith.addf %47, %49 : vector<4x8x4xf32>
    %51 = vector.extract_strided_slice %23 {offsets = [0, 0, 0], sizes = [4, 8, 4], strides = [1, 1, 1]} : vector<4x8x8xf32> to vector<4x8x4xf32>
    %52 = vector.extract_strided_slice %23 {offsets = [0, 0, 4], sizes = [4, 8, 4], strides = [1, 1, 1]} : vector<4x8x8xf32> to vector<4x8x4xf32>
    %53 = vector.extract_strided_slice %29 {offsets = [0, 0], sizes = [8, 4], strides = [1, 1]} : vector<8x8xf32> to vector<8x4xf32>
    %54 = vector.shape_cast %53 : vector<8x4xf32> to vector<1x8x4xf32>
    %55 = vector.extract_strided_slice %29 {offsets = [0, 4], sizes = [8, 4], strides = [1, 1]} : vector<8x8xf32> to vector<8x4xf32>
    %56 = vector.shape_cast %55 : vector<8x4xf32> to vector<1x8x4xf32>
    %57 = vector.extract_strided_slice %30 {offsets = [0, 0], sizes = [8, 4], strides = [1, 1]} : vector<8x8xf32> to vector<8x4xf32>
    %58 = vector.shape_cast %57 : vector<8x4xf32> to vector<1x8x4xf32>
    %59 = vector.extract_strided_slice %30 {offsets = [0, 4], sizes = [8, 4], strides = [1, 1]} : vector<8x8xf32> to vector<8x4xf32>
    %60 = vector.shape_cast %59 : vector<8x4xf32> to vector<1x8x4xf32>
    %61 = vector.broadcast %54 : vector<1x8x4xf32> to vector<4x8x4xf32>
    %62 = arith.mulf %51, %61 : vector<4x8x4xf32>
    %63 = vector.broadcast %58 : vector<1x8x4xf32> to vector<4x8x4xf32>
    %64 = arith.mulf %52, %63 : vector<4x8x4xf32>
    %65 = arith.subf %62, %64 : vector<4x8x4xf32>
    %66 = vector.broadcast %56 : vector<1x8x4xf32> to vector<4x8x4xf32>
    %67 = arith.mulf %52, %66 : vector<4x8x4xf32>
    %68 = vector.broadcast %60 : vector<1x8x4xf32> to vector<4x8x4xf32>
    %69 = arith.mulf %51, %68 : vector<4x8x4xf32>
    %70 = arith.addf %67, %69 : vector<4x8x4xf32>
    %71 = arith.truncf %45 : vector<4x8x4xf32> to vector<4x8x4xbf16>
    %72 = arith.truncf %65 : vector<4x8x4xf32> to vector<4x8x4xbf16>
    "tpu.trace_start"() <{level = 10 : i32, message = "hmd,hnd->hmn"}> : () -> ()
    %cst = arith.constant dense<0.000000e+00> : vector<4x8x8xf32>
    %73 = tpu.matmul %71, %72, %cst {dimension_numbers = #tpu.dot_dimension_numbers<[2], [2], [1], [1], [0, 0, 0, 1, 1, 1], [0], [0]>} : vector<4x8x4xbf16>, vector<4x8x4xbf16>, vector<4x8x8xf32> -> vector<4x8x8xf32>
    "tpu.trace_stop"() : () -> ()
    %74 = arith.truncf %50 : vector<4x8x4xf32> to vector<4x8x4xbf16>
    %75 = arith.truncf %70 : vector<4x8x4xf32> to vector<4x8x4xbf16>
    "tpu.trace_start"() <{level = 10 : i32, message = "hmd,hnd->hmn"}> : () -> ()
    %cst_6 = arith.constant dense<0.000000e+00> : vector<4x8x8xf32>
    %76 = tpu.matmul %74, %75, %cst_6 {dimension_numbers = #tpu.dot_dimension_numbers<[2], [2], [1], [1], [0, 0, 0, 1, 1, 1], [0], [0]>} : vector<4x8x4xbf16>, vector<4x8x4xbf16>, vector<4x8x8xf32> -> vector<4x8x8xf32>
    "tpu.trace_stop"() : () -> ()
    %77 = arith.addf %73, %76 : vector<4x8x8xf32>
    %cst_7 = arith.constant 0.353553385 : f32
    %78 = vector.broadcast %cst_7 : f32 to vector<4x8x8xf32>
    %79 = arith.mulf %77, %78 : vector<4x8x8xf32>
    %80 = tpu.iota {dimensions = array<i32: 0>} : vector<8x8xi32>
    %c0_i32 = arith.constant 0 : i32
    %81 = vector.broadcast %c0_i32 : i32 to vector<8x8xi32>
    %82 = arith.addi %81, %80 : vector<8x8xi32>
    %83 = tpu.iota {dimensions = array<i32: 1>} : vector<8x8xi32>
    %84 = arith.cmpi sle, %83, %82 : vector<8x8xi32>
    %85 = vector.shape_cast %84 : vector<8x8xi1> to vector<1x8x8xi1>
    %cst_8 = arith.constant -1.000000e+30 : f32
    %86 = vector.shape_cast %85 : vector<1x8x8xi1> to vector<1x8x8xi1>
    %87 = vector.broadcast %86 : vector<1x8x8xi1> to vector<4x8x8xi1>
    %88 = vector.broadcast %cst_8 : f32 to vector<4x8x8xf32>
    %89 = arith.select %87, %79, %88 : vector<4x8x8xi1>, vector<4x8x8xf32>
    %cst_9 = arith.constant dense<0xFF800000> : vector<4x8xf32>
    %90 = vector.multi_reduction <maximumf>, %89, %cst_9 [2] : vector<4x8x8xf32> to vector<4x8xf32>
    %91 = vector.shape_cast %90 : vector<4x8xf32> to vector<4x8x1xf32>
    %92 = vector.broadcast %91 : vector<4x8x1xf32> to vector<4x8x8xf32>
    %93 = arith.subf %89, %92 : vector<4x8x8xf32>
    %94 = math.exp %93 : vector<4x8x8xf32>
    %cst_10 = arith.constant dense<0.000000e+00> : vector<4x8xf32>
    %95 = vector.multi_reduction <add>, %94, %cst_10 [2] : vector<4x8x8xf32> to vector<4x8xf32>
    %96 = vector.shape_cast %95 : vector<4x8xf32> to vector<4x8x1xf32>
    %97 = vector.broadcast %96 : vector<4x8x1xf32> to vector<4x8x8xf32>
    %98 = arith.divf %94, %97 : vector<4x8x8xf32>
    %99 = arith.truncf %98 : vector<4x8x8xf32> to vector<4x8x8xbf16>
    %100 = arith.truncf %28 : vector<4x8x8xf32> to vector<4x8x8xbf16>
    "tpu.trace_start"() <{level = 10 : i32, message = "hmn,hnd->hmd"}> : () -> ()
    %cst_11 = arith.constant dense<0.000000e+00> : vector<4x8x8xf32>
    %101 = tpu.matmul %99, %100, %cst_11 {dimension_numbers = #tpu.dot_dimension_numbers<[2], [1], [1], [2], [0, 0, 0, 1, 1, 2], [0], [0]>} : vector<4x8x8xbf16>, vector<4x8x8xbf16>, vector<4x8x8xf32> -> vector<4x8x8xf32>
    "tpu.trace_stop"() : () -> ()
    %102 = vector.extract_strided_slice %101 {offsets = [0, 0, 0], sizes = [1, 8, 8], strides = [1, 1, 1]} : vector<4x8x8xf32> to vector<1x8x8xf32>
    %103 = vector.shape_cast %102 : vector<1x8x8xf32> to vector<8x8xf32>
    %104 = vector.extract_strided_slice %101 {offsets = [1, 0, 0], sizes = [1, 8, 8], strides = [1, 1, 1]} : vector<4x8x8xf32> to vector<1x8x8xf32>
    %105 = vector.shape_cast %104 : vector<1x8x8xf32> to vector<8x8xf32>
    %106 = vector.extract_strided_slice %101 {offsets = [2, 0, 0], sizes = [1, 8, 8], strides = [1, 1, 1]} : vector<4x8x8xf32> to vector<1x8x8xf32>
    %107 = vector.shape_cast %106 : vector<1x8x8xf32> to vector<8x8xf32>
    %108 = vector.extract_strided_slice %101 {offsets = [3, 0, 0], sizes = [1, 8, 8], strides = [1, 1, 1]} : vector<4x8x8xf32> to vector<1x8x8xf32>
    %109 = vector.shape_cast %108 : vector<1x8x8xf32> to vector<8x8xf32>
    %110 = tpu.concatenate %103, %105, %107, %109 in 1 : vector<8x8xf32>, vector<8x8xf32>, vector<8x8xf32>, vector<8x8xf32> -> vector<8x32xf32>
    %111 = arith.truncf %110 : vector<8x32xf32> to vector<8x32xbf16>
    %c0_12 = arith.constant 0 : index
    %c0_13 = arith.constant 0 : index
    %112 = vector.load %arg5[%c0_12, %c0_13] : memref<32x32xbf16, #tpu.memory_space<vmem>>, vector<32x32xbf16>
    %cst_14 = arith.constant dense<0.000000e+00> : vector<8x32xf32>
    %113 = tpu.matmul %111, %112, %cst_14 {dimension_numbers = #tpu.dot_dimension_numbers<[1], [0], [0], [1], [0, 0, 1, 1], [], []>} : vector<8x32xbf16>, vector<32x32xbf16>, vector<8x32xf32> -> vector<8x32xf32>
    %c0_15 = arith.constant 0 : index
    %c0_16 = arith.constant 0 : index
    %114 = vector.load %arg6[%c0_15, %c0_16] : memref<1x32xf32, #tpu.memory_space<vmem>>, vector<1x32xf32>
    %115 = vector.broadcast %114 : vector<1x32xf32> to vector<8x32xf32>
    %116 = arith.addf %113, %115 : vector<8x32xf32>
    %c0_17 = arith.constant 0 : index
    %c0_18 = arith.constant 0 : index
    %c0_19 = arith.constant 0 : index
    %117 = vector.load %arg7[%c0_17, %c0_18, %c0_19] : memref<1x8x32xf32, #tpu.memory_space<vmem>>, vector<1x8x32xf32>
    %118 = vector.shape_cast %117 : vector<1x8x32xf32> to vector<8x32xf32>
    %119 = arith.addf %116, %118 : vector<8x32xf32>
    %c0_20 = arith.constant 0 : index
    %c0_21 = arith.constant 0 : index
    %c0_22 = arith.constant 0 : index
    %120 = vector.load %arg8[%c0_20, %c0_21, %c0_22] : memref<1x8x32xf32, #tpu.memory_space<vmem>>, vector<1x8x32xf32>
    %121 = vector.shape_cast %120 : vector<1x8x32xf32> to vector<8x32xf32>
    %122 = vector.shape_cast %119 : vector<8x32xf32> to vector<1x8x32xf32>
    tpu.vector_store %arg8[%c0_20, %c0_21, %c0_22], %122 {strides = array<i32>} : memref<1x8x32xf32, #tpu.memory_space<vmem>>, vector<1x8x32xf32>,
    return
  }
  func.func @transform_0(%arg0: i32, %arg1: i32) -> (i32, i32, i32) {
    %c0_i32 = arith.constant 0 : i32
    %c0_i32_0 = arith.constant 0 : i32
    %c0_i32_1 = arith.constant 0 : i32
    return %arg0, %c0_i32, %c0_i32_0 : i32, i32, i32
  }
  func.func @transform_1(%arg0: i32, %arg1: i32) -> (i32, i32) {
    %c0_i32 = arith.constant 0 : i32
    %c0_i32_0 = arith.constant 0 : i32
    %c0_i32_1 = arith.constant 0 : i32
    return %c0_i32, %c0_i32_0 : i32, i32
  }
  func.func @transform_2(%arg0: i32, %arg1: i32) -> (i32, i32) {
    %c0_i32 = arith.constant 0 : i32
    %c0_i32_0 = arith.constant 0 : i32
    %c0_i32_1 = arith.constant 0 : i32
    return %c0_i32, %c0_i32_0 : i32, i32
  }
  func.func @transform_3(%arg0: i32, %arg1: i32) -> (i32, i32) {
    %c0_i32 = arith.constant 0 : i32
    %c0_i32_0 = arith.constant 0 : i32
    %c0_i32_1 = arith.constant 0 : i32
    return %c0_i32, %c0_i32_0 : i32, i32
  }
  func.func @transform_4(%arg0: i32, %arg1: i32) -> (i32, i32) {
    %c0_i32 = arith.constant 0 : i32
    %c0_i32_0 = arith.constant 0 : i32
    %c0_i32_1 = arith.constant 0 : i32
    return %c0_i32, %c0_i32_0 : i32, i32
  }
  func.func @transform_5(%arg0: i32, %arg1: i32) -> (i32, i32, i32) {
    %c0_i32 = arith.constant 0 : i32
    %c0_i32_0 = arith.constant 0 : i32
    return %arg0, %arg1, %c0_i32 : i32, i32, i32
  }
  func.func @transform_6(%arg0: i32, %arg1: i32) -> (i32, i32, i32) {
    %c0_i32 = arith.constant 0 : i32
    %c0_i32_0 = arith.constant 0 : i32
    return %arg0, %arg1, %c0_i32 : i32, i32, i32
  }
}

module attributes {stable_mosaic.version = 11 : i64} {
  func.func @_linear_kernel(%arg0: i32, %arg1: i32, %arg2: i32, %arg3: memref<16x128xf32, #tpu.memory_space<vmem>>, %arg4: memref<128x32xbf16, #tpu.memory_space<vmem>>, %arg5: memref<1x32xf32, #tpu.memory_space<vmem>>, %arg6: memref<16x32xf32, #tpu.memory_space<vmem>>, %arg7: memref<16x32xf32, #tpu.memory_space<vmem>>, %arg8: memref<16x32xf32, #tpu.memory_space<vmem>>) attributes {dimension_semantics = [#tpu.dimension_semantics<parallel>, #tpu.dimension_semantics<parallel>, #tpu.dimension_semantics<arbitrary>], iteration_bounds = array<i64: 1, 1, 1>, scalar_prefetch = 0 : i64, scratch_operands = 1 : i64, tpu.core_type = #tpu.core_type<tc>, window_params = [{transform_indices = @transform_0, window_bounds = array<i64: 16, 128>}, {transform_indices = @transform_1, window_bounds = array<i64: 128, 32>}, {transform_indices = @transform_2, window_bounds = array<i64: 1, 32>}, {transform_indices = @transform_3, window_bounds = array<i64: 16, 32>}, {transform_indices = @transform_4, window_bounds = array<i64: 16, 32>}]} {
    %c0_i32 = arith.constant 0 : i32
    %0 = arith.cmpi eq, %arg2, %c0_i32 : i32
    %1 = arith.extui %0 : i1 to i32
    %c0_i32_0 = arith.constant 0 : i32
    %2 = arith.cmpi ne, %1, %c0_i32_0 : i32
    scf.if %2 {
      %cst_10 = arith.constant 0.000000e+00 : f32
      %13 = vector.broadcast %cst_10 : f32 to vector<16x32xf32>
      %c0_11 = arith.constant 0 : index
      %c0_12 = arith.constant 0 : index
      %14 = vector.load %arg8[%c0_11, %c0_12] : memref<16x32xf32, #tpu.memory_space<vmem>>, vector<16x32xf32>
      tpu.vector_store %arg8[%c0_11, %c0_12], %13 {strides = array<i32>} : memref<16x32xf32, #tpu.memory_space<vmem>>, vector<16x32xf32>,
    } else {
    }
    %c0 = arith.constant 0 : index
    %c0_1 = arith.constant 0 : index
    %3 = vector.load %arg3[%c0, %c0_1] : memref<16x128xf32, #tpu.memory_space<vmem>>, vector<16x128xf32>
    %c0_2 = arith.constant 0 : index
    %c0_3 = arith.constant 0 : index
    %4 = vector.load %arg8[%c0_2, %c0_3] : memref<16x32xf32, #tpu.memory_space<vmem>>, vector<16x32xf32>
    %5 = arith.truncf %3 : vector<16x128xf32> to vector<16x128xbf16>
    %c0_4 = arith.constant 0 : index
    %c0_5 = arith.constant 0 : index
    %6 = vector.load %arg4[%c0_4, %c0_5] : memref<128x32xbf16, #tpu.memory_space<vmem>>, vector<128x32xbf16>
    %cst = arith.constant dense<0.000000e+00> : vector<16x32xf32>
    %7 = tpu.matmul %5, %6, %cst {dimension_numbers = #tpu.dot_dimension_numbers<[1], [0], [0], [1], [0, 0, 1, 1], [], []>} : vector<16x128xbf16>, vector<128x32xbf16>, vector<16x32xf32> -> vector<16x32xf32>
    %8 = arith.addf %4, %7 : vector<16x32xf32>
    %c0_6 = arith.constant 0 : index
    %c0_7 = arith.constant 0 : index
    %9 = vector.load %arg8[%c0_6, %c0_7] : memref<16x32xf32, #tpu.memory_space<vmem>>, vector<16x32xf32>
    tpu.vector_store %arg8[%c0_6, %c0_7], %8 {strides = array<i32>} : memref<16x32xf32, #tpu.memory_space<vmem>>, vector<16x32xf32>,
    %c0_i32_8 = arith.constant 0 : i32
    %10 = arith.cmpi eq, %arg2, %c0_i32_8 : i32
    %11 = arith.extui %10 : i1 to i32
    %c0_i32_9 = arith.constant 0 : i32
    %12 = arith.cmpi ne, %11, %c0_i32_9 : i32
    scf.if %12 {
      %c0_10 = arith.constant 0 : index
      %c0_11 = arith.constant 0 : index
      %13 = vector.load %arg8[%c0_10, %c0_11] : memref<16x32xf32, #tpu.memory_space<vmem>>, vector<16x32xf32>
      %c0_12 = arith.constant 0 : index
      %c0_13 = arith.constant 0 : index
      %14 = vector.load %arg5[%c0_12, %c0_13] : memref<1x32xf32, #tpu.memory_space<vmem>>, vector<1x32xf32>
      %15 = vector.broadcast %14 : vector<1x32xf32> to vector<16x32xf32>
      %16 = arith.addf %13, %15 : vector<16x32xf32>
      %c0_14 = arith.constant 0 : index
      %c0_15 = arith.constant 0 : index
      %17 = vector.load %arg6[%c0_14, %c0_15] : memref<16x32xf32, #tpu.memory_space<vmem>>, vector<16x32xf32>
      %18 = arith.addf %16, %17 : vector<16x32xf32>
      %c0_16 = arith.constant 0 : index
      %c0_17 = arith.constant 0 : index
      %19 = vector.load %arg7[%c0_16, %c0_17] : memref<16x32xf32, #tpu.memory_space<vmem>>, vector<16x32xf32>
      tpu.vector_store %arg7[%c0_16, %c0_17], %18 {strides = array<i32>} : memref<16x32xf32, #tpu.memory_space<vmem>>, vector<16x32xf32>,
    } else {
    }
    return
  }
  func.func @transform_0(%arg0: i32, %arg1: i32, %arg2: i32) -> (i32, i32) {
    %c0_i32 = arith.constant 0 : i32
    return %arg0, %arg2 : i32, i32
  }
  func.func @transform_1(%arg0: i32, %arg1: i32, %arg2: i32) -> (i32, i32) {
    %c0_i32 = arith.constant 0 : i32
    return %arg2, %arg1 : i32, i32
  }
  func.func @transform_2(%arg0: i32, %arg1: i32, %arg2: i32) -> (i32, i32) {
    %c0_i32 = arith.constant 0 : i32
    %c0_i32_0 = arith.constant 0 : i32
    return %c0_i32, %arg1 : i32, i32
  }
  func.func @transform_3(%arg0: i32, %arg1: i32, %arg2: i32) -> (i32, i32) {
    %c0_i32 = arith.constant 0 : i32
    return %arg0, %arg1 : i32, i32
  }
  func.func @transform_4(%arg0: i32, %arg1: i32, %arg2: i32) -> (i32, i32) {
    %c0_i32 = arith.constant 0 : i32
    return %arg0, %arg1 : i32, i32
  }
}

module attributes {stable_mosaic.version = 11 : i64} {
  func.func @_linear_kernel(%arg0: i32, %arg1: i32, %arg2: i32, %arg3: memref<16x32xf32, #tpu.memory_space<vmem>>, %arg4: memref<1x32xf32, #tpu.memory_space<vmem>>, %arg5: memref<1x32xf32, #tpu.memory_space<vmem>>, %arg6: memref<32x128xbf16, #tpu.memory_space<vmem>>, %arg7: memref<16x128xf32, #tpu.memory_space<vmem>>, %arg8: memref<16x128xf32, #tpu.memory_space<vmem>>) attributes {dimension_semantics = [#tpu.dimension_semantics<parallel>, #tpu.dimension_semantics<parallel>, #tpu.dimension_semantics<arbitrary>], iteration_bounds = array<i64: 1, 1, 1>, scalar_prefetch = 0 : i64, scratch_operands = 1 : i64, tpu.core_type = #tpu.core_type<tc>, window_params = [{transform_indices = @transform_0, window_bounds = array<i64: 16, 32>}, {pipeline_mode = #tpu.pipeline_mode<synchronous>, transform_indices = @transform_1, window_bounds = array<i64: 1, 32>}, {pipeline_mode = #tpu.pipeline_mode<synchronous>, transform_indices = @transform_2, window_bounds = array<i64: 1, 32>}, {transform_indices = @transform_3, window_bounds = array<i64: 32, 128>}, {transform_indices = @transform_4, window_bounds = array<i64: 16, 128>}]} {
    %c0_i32 = arith.constant 0 : i32
    %0 = arith.cmpi eq, %arg2, %c0_i32 : i32
    %1 = arith.extui %0 : i1 to i32
    %c0_i32_0 = arith.constant 0 : i32
    %2 = arith.cmpi ne, %1, %c0_i32_0 : i32
    scf.if %2 {
      %cst_19 = arith.constant 0.000000e+00 : f32
      %39 = vector.broadcast %cst_19 : f32 to vector<16x128xf32>
      %c0_20 = arith.constant 0 : index
      %c0_21 = arith.constant 0 : index
      %40 = vector.load %arg8[%c0_20, %c0_21] : memref<16x128xf32, #tpu.memory_space<vmem>>, vector<16x128xf32>
      tpu.vector_store %arg8[%c0_20, %c0_21], %39 {strides = array<i32>} : memref<16x128xf32, #tpu.memory_space<vmem>>, vector<16x128xf32>,
    } else {
    }
    %c0 = arith.constant 0 : index
    %c0_1 = arith.constant 0 : index
    %3 = vector.load %arg3[%c0, %c0_1] : memref<16x32xf32, #tpu.memory_space<vmem>>, vector<16x32xf32>
    %cst = arith.constant dense<0.000000e+00> : vector<16xf32>
    %4 = vector.multi_reduction <add>, %3, %cst [1] : vector<16x32xf32> to vector<16xf32>
    %5 = vector.shape_cast %4 : vector<16xf32> to vector<16x1xf32>
    %cst_2 = arith.constant 3.200000e+01 : f32
    %6 = vector.broadcast %cst_2 : f32 to vector<16x1xf32>
    %7 = arith.divf %5, %6 : vector<16x1xf32>
    %8 = vector.broadcast %7 : vector<16x1xf32> to vector<16x32xf32>
    %9 = arith.subf %3, %8 : vector<16x32xf32>
    %10 = vector.broadcast %7 : vector<16x1xf32> to vector<16x32xf32>
    %11 = arith.subf %3, %10 : vector<16x32xf32>
    %12 = arith.mulf %9, %11 : vector<16x32xf32>
    %cst_3 = arith.constant dense<0.000000e+00> : vector<16xf32>
    %13 = vector.multi_reduction <add>, %12, %cst_3 [1] : vector<16x32xf32> to vector<16xf32>
    %14 = vector.shape_cast %13 : vector<16xf32> to vector<16x1xf32>
    %cst_4 = arith.constant 3.200000e+01 : f32
    %15 = vector.broadcast %cst_4 : f32 to vector<16x1xf32>
    %16 = arith.divf %14, %15 : vector<16x1xf32>
    %17 = vector.broadcast %7 : vector<16x1xf32> to vector<16x32xf32>
    %18 = arith.subf %3, %17 : vector<16x32xf32>
    %cst_5 = arith.constant 9.99999974E-6 : f32
    %19 = vector.broadcast %cst_5 : f32 to vector<16x1xf32>
    %20 = arith.addf %16, %19 : vector<16x1xf32>
    %21 = math.rsqrt %20 : vector<16x1xf32>
    %22 = vector.broadcast %21 : vector<16x1xf32> to vector<16x32xf32>
    %23 = arith.mulf %18, %22 : vector<16x32xf32>
    %c0_6 = arith.constant 0 : index
    %c0_7 = arith.constant 0 : index
    %24 = vector.load %arg4[%c0_6, %c0_7] : memref<1x32xf32, #tpu.memory_space<vmem>>, vector<1x32xf32>
    %25 = vector.broadcast %24 : vector<1x32xf32> to vector<16x32xf32>
    %26 = arith.mulf %23, %25 : vector<16x32xf32>
    %c0_8 = arith.constant 0 : index
    %c0_9 = arith.constant 0 : index
    %27 = vector.load %arg5[%c0_8, %c0_9] : memref<1x32xf32, #tpu.memory_space<vmem>>, vector<1x32xf32>
    %28 = vector.broadcast %27 : vector<1x32xf32> to vector<16x32xf32>
    %29 = arith.addf %26, %28 : vector<16x32xf32>
    %c0_10 = arith.constant 0 : index
    %c0_11 = arith.constant 0 : index
    %30 = vector.load %arg8[%c0_10, %c0_11] : memref<16x128xf32, #tpu.memory_space<vmem>>, vector<16x128xf32>
    %31 = arith.truncf %29 : vector<16x32xf32> to vector<16x32xbf16>
    %c0_12 = arith.constant 0 : index
    %c0_13 = arith.constant 0 : index
    %32 = vector.load %arg6[%c0_12, %c0_13] : memref<32x128xbf16, #tpu.memory_space<vmem>>, vector<32x128xbf16>
    %cst_14 = arith.constant dense<0.000000e+00> : vector<16x128xf32>
    %33 = tpu.matmul %31, %32, %cst_14 {dimension_numbers = #tpu.dot_dimension_numbers<[1], [0], [0], [1], [0, 0, 1, 1], [], []>} : vector<16x32xbf16>, vector<32x128xbf16>, vector<16x128xf32> -> vector<16x128xf32>
    %34 = arith.addf %30, %33 : vector<16x128xf32>
    %c0_15 = arith.constant 0 : index
    %c0_16 = arith.constant 0 : index
    %35 = vector.load %arg8[%c0_15, %c0_16] : memref<16x128xf32, #tpu.memory_space<vmem>>, vector<16x128xf32>
    tpu.vector_store %arg8[%c0_15, %c0_16], %34 {strides = array<i32>} : memref<16x128xf32, #tpu.memory_space<vmem>>, vector<16x128xf32>,
    %c0_i32_17 = arith.constant 0 : i32
    %36 = arith.cmpi eq, %arg2, %c0_i32_17 : i32
    %37 = arith.extui %36 : i1 to i32
    %c0_i32_18 = arith.constant 0 : i32
    %38 = arith.cmpi ne, %37, %c0_i32_18 : i32
    scf.if %38 {
      %c0_19 = arith.constant 0 : index
      %c0_20 = arith.constant 0 : index
      %39 = vector.load %arg8[%c0_19, %c0_20] : memref<16x128xf32, #tpu.memory_space<vmem>>, vector<16x128xf32>
      %c0_21 = arith.constant 0 : index
      %c0_22 = arith.constant 0 : index
      %40 = vector.load %arg7[%c0_21, %c0_22] : memref<16x128xf32, #tpu.memory_space<vmem>>, vector<16x128xf32>
      tpu.vector_store %arg7[%c0_21, %c0_22], %39 {strides = array<i32>} : memref<16x128xf32, #tpu.memory_space<vmem>>, vector<16x128xf32>,
    } else {
    }
    return
  }
  func.func @transform_0(%arg0: i32, %arg1: i32, %arg2: i32) -> (i32, i32) {
    %c0_i32 = arith.constant 0 : i32
    return %arg0, %arg2 : i32, i32
  }
  func.func @transform_1(%arg0: i32, %arg1: i32, %arg2: i32) -> (i32, i32) {
    %c0_i32 = arith.constant 0 : i32
    %c0_i32_0 = arith.constant 0 : i32
    %c0_i32_1 = arith.constant 0 : i32
    return %c0_i32, %c0_i32_0 : i32, i32
  }
  func.func @transform_2(%arg0: i32, %arg1: i32, %arg2: i32) -> (i32, i32) {
    %c0_i32 = arith.constant 0 : i32
    %c0_i32_0 = arith.constant 0 : i32
    %c0_i32_1 = arith.constant 0 : i32
    return %c0_i32, %c0_i32_0 : i32, i32
  }
  func.func @transform_3(%arg0: i32, %arg1: i32, %arg2: i32) -> (i32, i32) {
    %c0_i32 = arith.constant 0 : i32
    return %arg2, %arg1 : i32, i32
  }
  func.func @transform_4(%arg0: i32, %arg1: i32, %arg2: i32) -> (i32, i32) {
    %c0_i32 = arith.constant 0 : i32
    return %arg0, %arg1 : i32, i32
  }
}

</mosaic_0001>

<llo_original>
// kernel: gpt_forward.12
$region0: #{gpt_forward.12}
  #allocation0 [shape = 'u32[]', space=smem, size = 0x4, offset = 0x4, fixed_abs, tag = 'smem constant byte address 0x4 - core index']
  #allocation1 [shape = 'u32[144,128]{1,0:T(1,128)}', space=vmem, size = 0x12000, scoped, tag = 'internal scratch']
  #allocation2 [shape = 'f32[16,32]{1,0:T(8,128)}', space=vmem, size = 0x2000, scoped, tag = 'scratch operand']
  %s0 = inlined_call_operand.vmem [shape: f32[16,128], index: 0, kind: input, shape index: {}]
  %s1 = inlined_call_operand.vmem [shape: bf16[128,32], index: 1, kind: input, shape index: {}]
  %s2 = inlined_call_operand.vmem [shape: f32[1,32], index: 2, kind: input, shape index: {}]
  %s3 = inlined_call_operand.vmem [shape: f32[16,32], index: 3, kind: input, shape index: {}]
  %s4 = inlined_call_operand.vmem [shape: f32[16,32], index: 4, kind: output, shape index: {}]
  %s5 = sld [smem:[#allocation0]]
  $region34: #{gpt_forward.12} parent=0
    _
  %s7 = ssub.s32 1, %s5
  %s8 = scalar_select 0, %s7, %s5
  // Predicated region
  $region2: #{gpt_forward.12} parent=0 // pred_check
    _
  $region3: #{gpt_forward.12} parent=0 // pred_check_branch
    %10 = sbr.rel (0) target = $region5
  $region4: #{gpt_forward.12} parent=0 // pred_region
    _
  $region5: #{gpt_forward.12} parent=0 // pred_fallthru
    _
  // Predicated region
  $region6: #{gpt_forward.12} parent=0 // pred_check
    _
  $region7: #{gpt_forward.12} parent=0 // pred_check_branch
    %12 = sbr.rel (0) target = $region9
  $region8: #{gpt_forward.12} parent=0 // pred_region
    _
  $region9: #{gpt_forward.12} parent=0 // pred_fallthru
    _
  // Predicated region
  $region10: #{gpt_forward.12} parent=0 // pred_check
    _
  $region11: #{gpt_forward.12} parent=0 // pred_check_branch
    %14 = sbr.rel (0) target = $region13
  $region12: #{gpt_forward.12} parent=0 // pred_region
    _
  $region13: #{gpt_forward.12} parent=0 // pred_fallthru
    _
  // Predicated region
  $region14: #{gpt_forward.12} parent=0 // pred_check
    _
  $region15: #{gpt_forward.12} parent=0 // pred_check_branch
    %16 = sbr.rel (0) target = $region17
  $region16: #{gpt_forward.12} parent=0 // pred_region
    _
  $region17: #{gpt_forward.12} parent=0 // pred_fallthru
    _
  %p18 = scmp.eq.s32.totalorder 0, 0
  // Predicated region
  $region18: #{gpt_forward.12} parent=0 // pred_check
    %p19 = pneg %p18
  $region19: #{gpt_forward.12} parent=0 // pred_check_branch
    %21 = sbr.rel (%p19) target = $region21
  $region20: #{gpt_forward.12} parent=0 // pred_region
    %vm22 = vcmask 261120
    %23 = vst.msk [vmem:[#allocation2] sm:$0xff] %vm22, 0.0
    %24 = vst.msk [vmem:[#allocation2 + $0x8] sm:$0xff] %vm22, 0.0
  $region21: #{gpt_forward.12} parent=0 // pred_fallthru
    _
  %v25 = vld [vmem:[%s0] sm:$0xff]
  %v26 = vld [vmem:[%s0 + $0x8] sm:$0xff]
  %v27 = vld [vmem:[#allocation2] sm:$0xff]
  %v28 = vld [vmem:[#allocation2 + $0x8] sm:$0xff]
  %v29 = vpack.c.bf16 %v26, %v25
  %v30 = vld [vmem:[%s1] sm:$0xf]
  %v31 = vld [vmem:[%s1 + $0x4] sm:$0xf]
  %v32 = vld [vmem:[%s1 + $0x8] sm:$0xf]
  %v33 = vld [vmem:[%s1 + $0xc] sm:$0xf]
  %v34 = vld [vmem:[%s1 + $0x10] sm:$0xf]
  %v35 = vld [vmem:[%s1 + $0x14] sm:$0xf]
  %v36 = vld [vmem:[%s1 + $0x18] sm:$0xf]
  %v37 = vld [vmem:[%s1 + $0x1c] sm:$0xf]
  %v38 = vld [vmem:[%s1 + $0x20] sm:$0xf]
  %v39 = vld [vmem:[%s1 + $0x24] sm:$0xf]
  %v40 = vld [vmem:[%s1 + $0x28] sm:$0xf]
  %v41 = vld [vmem:[%s1 + $0x2c] sm:$0xf]
  %v42 = vld [vmem:[%s1 + $0x30] sm:$0xf]
  %v43 = vld [vmem:[%s1 + $0x34] sm:$0xf]
  %v44 = vld [vmem:[%s1 + $0x38] sm:$0xf]
  %v45 = vld [vmem:[%s1 + $0x3c] sm:$0xf]
  %v62 = vunpack.c.l.b16 %v30
  %v63 = vunpack.c.l.b16 %v31
  %v64 = vunpack.c.l.b16 %v32
  %v65 = vunpack.c.l.b16 %v33
  %v66 = vunpack.c.l.b16 %v34
  %v67 = vunpack.c.l.b16 %v35
  %v68 = vunpack.c.l.b16 %v36
  %v69 = vunpack.c.l.b16 %v37
  %v70 = vunpack.c.l.b16 %v38
  %v71 = vunpack.c.l.b16 %v39
  %v72 = vunpack.c.l.b16 %v40
  %v73 = vunpack.c.l.b16 %v41
  %v74 = vunpack.c.l.b16 %v42
  %v75 = vunpack.c.l.b16 %v43
  %v76 = vunpack.c.l.b16 %v44
  %v77 = vunpack.c.l.b16 %v45
  %v78 = vpack.c.b16 %v63, %v62
  %v79 = vpack.c.b16 %v65, %v64
  %v80 = vpack.c.b16 %v67, %v66
  %v81 = vpack.c.b16 %v69, %v68
  %v82 = vpack.c.b16 %v71, %v70
  %v83 = vpack.c.b16 %v73, %v72
  %v84 = vpack.c.b16 %v75, %v74
  %v85 = vpack.c.b16 %v77, %v76
  %94 = vmatprep.subr.bf16.mxu0 0
  %95 = vmatpush1.bf16.msra.mxu0 %v85
  %96 = vmatprep.subr.bf16.mxu0 0
  %97 = vmatpush1.bf16.msra.mxu0 %v84
  %98 = vmatprep.subr.bf16.mxu0 0
  %99 = vmatpush1.bf16.msra.mxu0 %v83
  %100 = vmatprep.subr.bf16.mxu0 0
  %101 = vmatpush1.bf16.msra.mxu0 %v82
  %102 = vmatprep.subr.bf16.mxu0 0
  %103 = vmatpush1.bf16.msra.mxu0 %v81
  %104 = vmatprep.subr.bf16.mxu0 0
  %105 = vmatpush1.bf16.msra.mxu0 %v80
  %106 = vmatprep.subr.bf16.mxu0 0
  %107 = vmatpush1.bf16.msra.mxu0 %v79
  %108 = vmatprep.subr.bf16.mxu0 0
  %109 = vmatpush1.bf16.msra.mxu0 %v78
  %110 = vmatprep.subr.bf16.mxu0 0
  %111 = vmatpush2.bf16.msra.mxu0 0
  %112 = vmatprep.subr.bf16.mxu0 0
  %113 = vmatpush2.bf16.msra.mxu0 0
  %114 = vmatprep.subr.bf16.mxu0 0
  %115 = vmatpush2.bf16.msra.mxu0 0
  %116 = vmatprep.subr.bf16.mxu0 0
  %117 = vmatpush2.bf16.msra.mxu0 0
  %118 = vmatprep.subr.bf16.mxu0 0
  %119 = vmatpush2.bf16.msra.mxu0 0
  %120 = vmatprep.subr.bf16.mxu0 0
  %121 = vmatpush2.bf16.msra.mxu0 0
  %122 = vmatprep.subr.bf16.mxu0 0
  %123 = vmatpush2.bf16.msra.mxu0 0
  %124 = vmatprep.subr.bf16.mxu0 0
  %125 = vmatpush2.bf16.msra.mxu0 0
  %126 = vmatprep.mubr.bf16.mxu0 0
  %127 = vmatmul.mubr.bf16.gmra.mxu0 %v29
  %v128 = vpop.f32.mrf.mxu0
  %v129 = vadd.f32 0.0, %v128
  %v130 = vpop.f32.mrf.mxu0
  %v131 = vpop.f32.mrf.mxu0
  %v132 = vadd.f32 0.0, %v131
  %v133 = vpop.f32.mrf.mxu0
  %134 = vdwg.mxu0
  %v135 = vadd.f32 %v27, %v129
  %v136 = vadd.f32 %v28, %v132
  %vm137 = vcmask 261120
  %138 = vst.msk [vmem:[#allocation2] sm:$0xff] %vm137, %v135
  %139 = vst.msk [vmem:[#allocation2 + $0x8] sm:$0xff] %vm137, %v136
  // Predicated region
  $region22: #{gpt_forward.12} parent=0 // pred_check
    %p140 = pneg %p18
  $region23: #{gpt_forward.12} parent=0 // pred_check_branch
    %142 = sbr.rel (%p140) target = $region25
  $region24: #{gpt_forward.12} parent=0 // pred_region
    %v143 = vld [vmem:[#allocation2] sm:$0xff]
    %v144 = vld [vmem:[#allocation2 + $0x8] sm:$0xff]
    %v145 = vld [vmem:[%s2] sm:$0x1]
    %v147 = vlaneseq
    %v148 = vshrl.u32 %v147, 7
    %v149 = vsub.s32 0, %v148
    %v150 = vrot.slane %v145, %v149
    %v152 = vadd.f32 %v143, %v150
    %v153 = vadd.f32 %v144, %v150
    %v154 = vld [vmem:[%s3] sm:$0xff]
    %v155 = vld [vmem:[%s3 + $0x8] sm:$0xff]
    %v156 = vadd.f32 %v152, %v154
    %v157 = vadd.f32 %v153, %v155
    %158 = vst.msk [vmem:[%s4] sm:$0xff] %vm137, %v156
    %159 = vst.msk [vmem:[%s4 + $0x8] sm:$0xff] %vm137, %v157
  $region25: #{gpt_forward.12} parent=0 // pred_fallthru
    _
  // Predicated region
  $region26: #{gpt_forward.12} parent=0 // pred_check
    _
  $region27: #{gpt_forward.12} parent=0 // pred_check_branch
    %161 = sbr.rel (0) target = $region29
  $region28: #{gpt_forward.12} parent=0 // pred_region
    _
  $region29: #{gpt_forward.12} parent=0 // pred_fallthru
    _
  // Predicated region
  $region30: #{gpt_forward.12} parent=0 // pred_check
    _
  $region31: #{gpt_forward.12} parent=0 // pred_check_branch
    %163 = sbr.rel (0) target = $region33
  $region32: #{gpt_forward.12} parent=0 // pred_region
    _
  $region33: #{gpt_forward.12} parent=0 // pred_fallthru
    _

// kernel: gpt_forward.9
$region0: #{gpt_forward.9}
  #allocation0 [shape = 'u32[]', space=smem, size = 0x4, offset = 0x4, fixed_abs, tag = 'smem constant byte address 0x4 - core index']
  #allocation1 [shape = 'u32[144,128]{1,0:T(1,128)}', space=vmem, size = 0x12000, scoped, tag = 'internal scratch']
  #allocation2 [shape = 'f32[16,96]{1,0:T(8,128)}', space=vmem, size = 0x2000, scoped, tag = 'scratch operand']
  %s0 = inlined_call_operand.vmem [shape: f32[16,32], index: 0, kind: input, shape index: {}]
  %s1 = inlined_call_operand.vmem [shape: f32[1,32], index: 1, kind: input, shape index: {}]
  %s2 = inlined_call_operand.vmem [shape: f32[1,32], index: 2, kind: input, shape index: {}]
  %s3 = inlined_call_operand.vmem [shape: bf16[32,96], index: 3, kind: input, shape index: {}]
  %s4 = inlined_call_operand.vmem [shape: f32[1,96], index: 4, kind: input, shape index: {}]
  %s5 = inlined_call_operand.vmem [shape: f32[16,96], index: 5, kind: output, shape index: {}]
  %s6 = sld [smem:[#allocation0]]
  $region38: #{gpt_forward.9} parent=0
    _
  %s8 = ssub.s32 1, %s6
  %s9 = scalar_select 0, %s8, %s6
  // Predicated region
  $region2: #{gpt_forward.9} parent=0 // pred_check
    _
  $region3: #{gpt_forward.9} parent=0 // pred_check_branch
    %11 = sbr.rel (0) target = $region5
  $region4: #{gpt_forward.9} parent=0 // pred_region
    _
  $region5: #{gpt_forward.9} parent=0 // pred_fallthru
    _
  // Predicated region
  $region6: #{gpt_forward.9} parent=0 // pred_check
    _
  $region7: #{gpt_forward.9} parent=0 // pred_check_branch
    %13 = sbr.rel (0) target = $region9
  $region8: #{gpt_forward.9} parent=0 // pred_region
    _
  $region9: #{gpt_forward.9} parent=0 // pred_fallthru
    _
  // Predicated region
  $region10: #{gpt_forward.9} parent=0 // pred_check
    _
  $region11: #{gpt_forward.9} parent=0 // pred_check_branch
    %15 = sbr.rel (0) target = $region13
  $region12: #{gpt_forward.9} parent=0 // pred_region
    _
  $region13: #{gpt_forward.9} parent=0 // pred_fallthru
    _
  // Predicated region
  $region14: #{gpt_forward.9} parent=0 // pred_check
    _
  $region15: #{gpt_forward.9} parent=0 // pred_check_branch
    %17 = sbr.rel (0) target = $region17
  $region16: #{gpt_forward.9} parent=0 // pred_region
    _
  $region17: #{gpt_forward.9} parent=0 // pred_fallthru
    _
  // Predicated region
  $region18: #{gpt_forward.9} parent=0 // pred_check
    _
  $region19: #{gpt_forward.9} parent=0 // pred_check_branch
    %19 = sbr.rel (0) target = $region21
  $region20: #{gpt_forward.9} parent=0 // pred_region
    _
  $region21: #{gpt_forward.9} parent=0 // pred_fallthru
    _
  %p21 = scmp.eq.s32.totalorder 0, 0
  // Predicated region
  $region22: #{gpt_forward.9} parent=0 // pred_check
    %p22 = pneg %p21
  $region23: #{gpt_forward.9} parent=0 // pred_check_branch
    %24 = sbr.rel (%p22) target = $region25
  $region24: #{gpt_forward.9} parent=0 // pred_region
    %vm25 = vcmask 785408
    %26 = vst.msk [vmem:[#allocation2] sm:$0xff] %vm25, 0.0
    %27 = vst.msk [vmem:[#allocation2 + $0x8] sm:$0xff] %vm25, 0.0
  $region25: #{gpt_forward.9} parent=0 // pred_fallthru
    _
  %v28 = vld [vmem:[%s0] sm:$0xff]
  %v29 = vld [vmem:[%s0 + $0x8] sm:$0xff]
  %vm30 = vcmask 261120
  %v31 = vsel %vm30, %v28, 0.0
  %32 = vadd.xlane.f32.xlu0 %v31
  %v33 = vpop.xlane.xlu0 %32
  %v34 = vsel %vm30, %v29, 0.0
  %35 = vadd.xlane.f32.xlu0 %v34
  %v36 = vpop.xlane.xlu0 %35
  %v37 = vrcp.pop 32.0
  %v38 = vmul.f32 %v33, %v37
  %v39 = vmul.f32 %v36, %v37
  %v40 = vsub.f32 %v28, %v38
  %v41 = vsub.f32 %v29, %v39
  %v42 = vmul.f32 %v40, %v40
  %v43 = vmul.f32 %v41, %v41
  %v44 = vsel %vm30, %v42, 0.0
  %45 = vadd.xlane.f32.xlu0 %v44
  %v46 = vpop.xlane.xlu0 %45
  %v47 = vsel %vm30, %v43, 0.0
  %48 = vadd.xlane.f32.xlu0 %v47
  %v49 = vpop.xlane.xlu0 %48
  %v50 = vmul.f32 %v46, %v37
  %v51 = vmul.f32 %v49, %v37
  %v52 = vadd.f32 %v50, 1e-05
  %v53 = vadd.f32 %v51, 1e-05
  %v54 = vrsqrt.pop %v52
  %v55 = vrsqrt.pop %v53
  %v56 = vmul.f32 %v40, %v54
  %v57 = vmul.f32 %v41, %v55
  %v58 = vld [vmem:[%s1] sm:$0x1]
  %v60 = vlaneseq
  %v61 = vshrl.u32 %v60, 7
  %v62 = vsub.s32 0, %v61
  %v63 = vrot.slane %v58, %v62
  %v65 = vmul.f32 %v56, %v63
  %v66 = vmul.f32 %v57, %v63
  %v67 = vld [vmem:[%s2] sm:$0x1]
  %v69 = vlaneseq
  %v70 = vshrl.u32 %v69, 7
  %v71 = vsub.s32 0, %v70
  %v72 = vrot.slane %v67, %v71
  %v74 = vadd.f32 %v65, %v72
  %v75 = vadd.f32 %v66, %v72
  %v76 = vld [vmem:[#allocation2] sm:$0xff]
  %v77 = vld [vmem:[#allocation2 + $0x8] sm:$0xff]
  %v78 = vpack.c.bf16 %v75, %v74
  %v79 = vld [vmem:[%s3] sm:$0xf]
  %v80 = vld [vmem:[%s3 + $0x4] sm:$0xf]
  %v81 = vld [vmem:[%s3 + $0x8] sm:$0xf]
  %v82 = vld [vmem:[%s3 + $0xc] sm:$0xf]
  %v87 = vunpack.c.l.b16 %v79
  %v88 = vunpack.c.l.b16 %v80
  %v89 = vunpack.c.l.b16 %v81
  %v90 = vunpack.c.l.b16 %v82
  %v91 = vpack.c.b16 %v88, %v87
  %v92 = vpack.c.b16 %v90, %v89
  %v96 = vsel %vm30, %v78, 0
  %98 = vmatprep.subr.bf16.mxu0 0
  %99 = vmatpush1.bf16.msra.mxu0 0
  %100 = vmatprep.subr.bf16.mxu0 0
  %101 = vmatpush1.bf16.msra.mxu0 0
  %102 = vmatprep.subr.bf16.mxu0 0
  %103 = vmatpush1.bf16.msra.mxu0 0
  %104 = vmatprep.subr.bf16.mxu0 0
  %105 = vmatpush1.bf16.msra.mxu0 0
  %106 = vmatprep.subr.bf16.mxu0 0
  %107 = vmatpush1.bf16.msra.mxu0 0
  %108 = vmatprep.subr.bf16.mxu0 0
  %109 = vmatpush1.bf16.msra.mxu0 0
  %110 = vmatprep.subr.bf16.mxu0 0
  %111 = vmatpush1.bf16.msra.mxu0 %v92
  %112 = vmatprep.subr.bf16.mxu0 0
  %113 = vmatpush1.bf16.msra.mxu0 %v91
  %114 = vmatprep.subr.bf16.mxu0 0
  %115 = vmatpush2.bf16.msra.mxu0 0
  %116 = vmatprep.subr.bf16.mxu0 0
  %117 = vmatpush2.bf16.msra.mxu0 0
  %118 = vmatprep.subr.bf16.mxu0 0
  %119 = vmatpush2.bf16.msra.mxu0 0
  %120 = vmatprep.subr.bf16.mxu0 0
  %121 = vmatpush2.bf16.msra.mxu0 0
  %122 = vmatprep.subr.bf16.mxu0 0
  %123 = vmatpush2.bf16.msra.mxu0 0
  %124 = vmatprep.subr.bf16.mxu0 0
  %125 = vmatpush2.bf16.msra.mxu0 0
  %126 = vmatprep.subr.bf16.mxu0 0
  %127 = vmatpush2.bf16.msra.mxu0 0
  %128 = vmatprep.subr.bf16.mxu0 0
  %129 = vmatpush2.bf16.msra.mxu0 0
  %130 = vmatprep.mubr.bf16.mxu0 0
  %131 = vmatmul.mubr.bf16.gmra.mxu0 %v96
  %v132 = vpop.f32.mrf.mxu0
  %v133 = vadd.f32 0.0, %v132
  %v134 = vpop.f32.mrf.mxu0
  %v135 = vpop.f32.mrf.mxu0
  %v136 = vadd.f32 0.0, %v135
  %v137 = vpop.f32.mrf.mxu0
  %138 = vdwg.mxu0
  %v139 = vadd.f32 %v76, %v133
  %v140 = vadd.f32 %v77, %v136
  %vm141 = vcmask 785408
  %142 = vst.msk [vmem:[#allocation2] sm:$0xff] %vm141, %v139
  %143 = vst.msk [vmem:[#allocation2 + $0x8] sm:$0xff] %vm141, %v140
  // Predicated region
  $region26: #{gpt_forward.9} parent=0 // pred_check
    %p144 = pneg %p21
  $region27: #{gpt_forward.9} parent=0 // pred_check_branch
    %146 = sbr.rel (%p144) target = $region29
  $region28: #{gpt_forward.9} parent=0 // pred_region
    %v147 = vld [vmem:[#allocation2] sm:$0xff]
    %v148 = vld [vmem:[#allocation2 + $0x8] sm:$0xff]
    %v149 = vld [vmem:[%s4] sm:$0x1]
    %v151 = vlaneseq
    %v152 = vshrl.u32 %v151, 7
    %v153 = vsub.s32 0, %v152
    %v154 = vrot.slane %v149, %v153
    %v156 = vadd.f32 %v147, %v154
    %v157 = vadd.f32 %v148, %v154
    %158 = vst.msk [vmem:[%s5] sm:$0xff] %vm141, %v156
    %159 = vst.msk [vmem:[%s5 + $0x8] sm:$0xff] %vm141, %v157
  $region29: #{gpt_forward.9} parent=0 // pred_fallthru
    _
  // Predicated region
  $region30: #{gpt_forward.9} parent=0 // pred_check
    _
  $region31: #{gpt_forward.9} parent=0 // pred_check_branch
    %161 = sbr.rel (0) target = $region33
  $region32: #{gpt_forward.9} parent=0 // pred_region
    _
  $region33: #{gpt_forward.9} parent=0 // pred_fallthru
    _
  // Predicated region
  $region34: #{gpt_forward.9} parent=0 // pred_check
    _
  $region35: #{gpt_forward.9} parent=0 // pred_check_branch
    %163 = sbr.rel (0) target = $region37
  $region36: #{gpt_forward.9} parent=0 // pred_region
    _
  $region37: #{gpt_forward.9} parent=0 // pred_fallthru
    _

// kernel: gpt_forward.11
$region0: #{gpt_forward.11}
  #allocation0 [shape = 'u32[]', space=smem, size = 0x4, offset = 0x4, fixed_abs, tag = 'smem constant byte address 0x4 - core index']
  #allocation1 [shape = 'u32[144,128]{1,0:T(1,128)}', space=vmem, size = 0x12000, scoped, tag = 'internal scratch']
  #allocation2 [shape = 'f32[16,128]{1,0:T(8,128)}', space=vmem, size = 0x2000, scoped, tag = 'scratch operand']
  %s0 = inlined_call_operand.vmem [shape: f32[16,32], index: 0, kind: input, shape index: {}]
  %s1 = inlined_call_operand.vmem [shape: f32[1,32], index: 1, kind: input, shape index: {}]
  %s2 = inlined_call_operand.vmem [shape: f32[1,32], index: 2, kind: input, shape index: {}]
  %s3 = inlined_call_operand.vmem [shape: bf16[32,128], index: 3, kind: input, shape index: {}]
  %s4 = inlined_call_operand.vmem [shape: f32[1,128], index: 4, kind: input, shape index: {}]
  %s5 = inlined_call_operand.vmem [shape: f32[16,128], index: 5, kind: output, shape index: {}]
  %s6 = sld [smem:[#allocation0]]
  $region38: #{gpt_forward.11} parent=0
    _
  %s8 = ssub.s32 1, %s6
  %s9 = scalar_select 0, %s8, %s6
  // Predicated region
  $region2: #{gpt_forward.11} parent=0 // pred_check
    _
  $region3: #{gpt_forward.11} parent=0 // pred_check_branch
    %11 = sbr.rel (0) target = $region5
  $region4: #{gpt_forward.11} parent=0 // pred_region
    _
  $region5: #{gpt_forward.11} parent=0 // pred_fallthru
    _
  // Predicated region
  $region6: #{gpt_forward.11} parent=0 // pred_check
    _
  $region7: #{gpt_forward.11} parent=0 // pred_check_branch
    %13 = sbr.rel (0) target = $region9
  $region8: #{gpt_forward.11} parent=0 // pred_region
    _
  $region9: #{gpt_forward.11} parent=0 // pred_fallthru
    _
  // Predicated region
  $region10: #{gpt_forward.11} parent=0 // pred_check
    _
  $region11: #{gpt_forward.11} parent=0 // pred_check_branch
    %15 = sbr.rel (0) target = $region13
  $region12: #{gpt_forward.11} parent=0 // pred_region
    _
  $region13: #{gpt_forward.11} parent=0 // pred_fallthru
    _
  // Predicated region
  $region14: #{gpt_forward.11} parent=0 // pred_check
    _
  $region15: #{gpt_forward.11} parent=0 // pred_check_branch
    %17 = sbr.rel (0) target = $region17
  $region16: #{gpt_forward.11} parent=0 // pred_region
    _
  $region17: #{gpt_forward.11} parent=0 // pred_fallthru
    _
  // Predicated region
  $region18: #{gpt_forward.11} parent=0 // pred_check
    _
  $region19: #{gpt_forward.11} parent=0 // pred_check_branch
    %19 = sbr.rel (0) target = $region21
  $region20: #{gpt_forward.11} parent=0 // pred_region
    _
  $region21: #{gpt_forward.11} parent=0 // pred_fallthru
    _
  %p21 = scmp.eq.s32.totalorder 0, 0
  // Predicated region
  $region22: #{gpt_forward.11} parent=0 // pred_check
    %p22 = pneg %p21
  $region23: #{gpt_forward.11} parent=0 // pred_check_branch
    %24 = sbr.rel (%p22) target = $region25
  $region24: #{gpt_forward.11} parent=0 // pred_region
    %25 = vst [vmem:[#allocation2] sm:$0xff] 0.0
    %26 = vst [vmem:[#allocation2 + $0x8] sm:$0xff] 0.0
  $region25: #{gpt_forward.11} parent=0 // pred_fallthru
    _
  %v27 = vld [vmem:[%s0] sm:$0xff]
  %v28 = vld [vmem:[%s0 + $0x8] sm:$0xff]
  %vm29 = vcmask 261120
  %v30 = vsel %vm29, %v27, 0.0
  %31 = vadd.xlane.f32.xlu0 %v30
  %v32 = vpop.xlane.xlu0 %31
  %v33 = vsel %vm29, %v28, 0.0
  %34 = vadd.xlane.f32.xlu0 %v33
  %v35 = vpop.xlane.xlu0 %34
  %v36 = vrcp.pop 32.0
  %v37 = vmul.f32 %v32, %v36
  %v38 = vmul.f32 %v35, %v36
  %v39 = vsub.f32 %v27, %v37
  %v40 = vsub.f32 %v28, %v38
  %v41 = vmul.f32 %v39, %v39
  %v42 = vmul.f32 %v40, %v40
  %v43 = vsel %vm29, %v41, 0.0
  %44 = vadd.xlane.f32.xlu0 %v43
  %v45 = vpop.xlane.xlu0 %44
  %v46 = vsel %vm29, %v42, 0.0
  %47 = vadd.xlane.f32.xlu0 %v46
  %v48 = vpop.xlane.xlu0 %47
  %v49 = vmul.f32 %v45, %v36
  %v50 = vmul.f32 %v48, %v36
  %v51 = vadd.f32 %v49, 1e-05
  %v52 = vadd.f32 %v50, 1e-05
  %v53 = vrsqrt.pop %v51
  %v54 = vrsqrt.pop %v52
  %v55 = vmul.f32 %v39, %v53
  %v56 = vmul.f32 %v40, %v54
  %v57 = vld [vmem:[%s1] sm:$0x1]
  %v59 = vlaneseq
  %v60 = vshrl.u32 %v59, 7
  %v61 = vsub.s32 0, %v60
  %v62 = vrot.slane %v57, %v61
  %v64 = vmul.f32 %v55, %v62
  %v65 = vmul.f32 %v56, %v62
  %v66 = vld [vmem:[%s2] sm:$0x1]
  %v68 = vlaneseq
  %v69 = vshrl.u32 %v68, 7
  %v70 = vsub.s32 0, %v69
  %v71 = vrot.slane %v66, %v70
  %v73 = vadd.f32 %v64, %v71
  %v74 = vadd.f32 %v65, %v71
  %v75 = vld [vmem:[#allocation2] sm:$0xff]
  %v76 = vld [vmem:[#allocation2 + $0x8] sm:$0xff]
  %v77 = vpack.c.bf16 %v74, %v73
  %v78 = vld [vmem:[%s3] sm:$0xf]
  %v79 = vld [vmem:[%s3 + $0x4] sm:$0xf]
  %v80 = vld [vmem:[%s3 + $0x8] sm:$0xf]
  %v81 = vld [vmem:[%s3 + $0xc] sm:$0xf]
  %v86 = vunpack.c.l.b16 %v78
  %v87 = vunpack.c.l.b16 %v79
  %v88 = vunpack.c.l.b16 %v80
  %v89 = vunpack.c.l.b16 %v81
  %v90 = vpack.c.b16 %v87, %v86
  %v91 = vpack.c.b16 %v89, %v88
  %v95 = vsel %vm29, %v77, 0
  %97 = vmatprep.subr.bf16.mxu0 0
  %98 = vmatpush1.bf16.msra.mxu0 0
  %99 = vmatprep.subr.bf16.mxu0 0
  %100 = vmatpush1.bf16.msra.mxu0 0
  %101 = vmatprep.subr.bf16.mxu0 0
  %102 = vmatpush1.bf16.msra.mxu0 0
  %103 = vmatprep.subr.bf16.mxu0 0
  %104 = vmatpush1.bf16.msra.mxu0 0
  %105 = vmatprep.subr.bf16.mxu0 0
  %106 = vmatpush1.bf16.msra.mxu0 0
  %107 = vmatprep.subr.bf16.mxu0 0
  %108 = vmatpush1.bf16.msra.mxu0 0
  %109 = vmatprep.subr.bf16.mxu0 0
  %110 = vmatpush1.bf16.msra.mxu0 %v91
  %111 = vmatprep.subr.bf16.mxu0 0
  %112 = vmatpush1.bf16.msra.mxu0 %v90
  %113 = vmatprep.subr.bf16.mxu0 0
  %114 = vmatpush2.bf16.msra.mxu0 0
  %115 = vmatprep.subr.bf16.mxu0 0
  %116 = vmatpush2.bf16.msra.mxu0 0
  %117 = vmatprep.subr.bf16.mxu0 0
  %118 = vmatpush2.bf16.msra.mxu0 0
  %119 = vmatprep.subr.bf16.mxu0 0
  %120 = vmatpush2.bf16.msra.mxu0 0
  %121 = vmatprep.subr.bf16.mxu0 0
  %122 = vmatpush2.bf16.msra.mxu0 0
  %123 = vmatprep.subr.bf16.mxu0 0
  %124 = vmatpush2.bf16.msra.mxu0 0
  %125 = vmatprep.subr.bf16.mxu0 0
  %126 = vmatpush2.bf16.msra.mxu0 0
  %127 = vmatprep.subr.bf16.mxu0 0
  %128 = vmatpush2.bf16.msra.mxu0 0
  %129 = vmatprep.mubr.bf16.mxu0 0
  %130 = vmatmul.mubr.bf16.gmra.mxu0 %v95
  %v131 = vpop.f32.mrf.mxu0
  %v132 = vadd.f32 0.0, %v131
  %v133 = vpop.f32.mrf.mxu0
  %v134 = vpop.f32.mrf.mxu0
  %v135 = vadd.f32 0.0, %v134
  %v136 = vpop.f32.mrf.mxu0
  %137 = vdwg.mxu0
  %v138 = vadd.f32 %v75, %v132
  %v139 = vadd.f32 %v76, %v135
  %140 = vst [vmem:[#allocation2] sm:$0xff] %v138
  %141 = vst [vmem:[#allocation2 + $0x8] sm:$0xff] %v139
  // Predicated region
  $region26: #{gpt_forward.11} parent=0 // pred_check
    %p142 = pneg %p21
  $region27: #{gpt_forward.11} parent=0 // pred_check_branch
    %144 = sbr.rel (%p142) target = $region29
  $region28: #{gpt_forward.11} parent=0 // pred_region
    %v145 = vld [vmem:[#allocation2] sm:$0xff]
    %v146 = vld [vmem:[#allocation2 + $0x8] sm:$0xff]
    %v147 = vld [vmem:[%s4] sm:$0x1]
    %v149 = vlaneseq
    %v150 = vshrl.u32 %v149, 7
    %v151 = vsub.s32 0, %v150
    %v152 = vrot.slane %v147, %v151
    %v154 = vadd.f32 %v145, %v152
    %v155 = vadd.f32 %v146, %v152
    %v156 = vmul.f32 %v154, 0.5
    %v157 = vmul.f32 %v155, 0.5
    %v158 = vmul.f32 %v154, 0.70710677
    %v159 = vmul.f32 %v155, 0.70710677
    %v160 = verf.f32.pop %v158
    %v161 = verf.f32.pop %v159
    %v162 = vadd.f32 %v160, 1.0
    %v163 = vadd.f32 %v161, 1.0
    %v164 = vmul.f32 %v156, %v162
    %v165 = vmul.f32 %v157, %v163
    %166 = vst [vmem:[%s5] sm:$0xff] %v164
    %167 = vst [vmem:[%s5 + $0x8] sm:$0xff] %v165
  $region29: #{gpt_forward.11} parent=0 // pred_fallthru
    _
  // Predicated region
  $region30: #{gpt_forward.11} parent=0 // pred_check
    _
  $region31: #{gpt_forward.11} parent=0 // pred_check_branch
    %169 = sbr.rel (0) target = $region33
  $region32: #{gpt_forward.11} parent=0 // pred_region
    _
  $region33: #{gpt_forward.11} parent=0 // pred_fallthru
    _
  // Predicated region
  $region34: #{gpt_forward.11} parent=0 // pred_check
    _
  $region35: #{gpt_forward.11} parent=0 // pred_check_branch
    %171 = sbr.rel (0) target = $region37
  $region36: #{gpt_forward.11} parent=0 // pred_region
    _
  $region37: #{gpt_forward.11} parent=0 // pred_fallthru
    _

// kernel: gpt_forward.10
$region0: #{gpt_forward.10}
  #allocation0 [shape = 'u32[]', space=smem, size = 0x4, offset = 0x4, fixed_abs, tag = 'smem constant byte address 0x4 - core index']
  #allocation1 [shape = 'u32[144,128]{1,0:T(1,128)}', space=vmem, size = 0x12000, scoped, tag = 'internal scratch']
  %s0 = inlined_call_operand.vmem [shape: f32[2,8,96], index: 0, kind: input, shape index: {}]
  %s1 = inlined_call_operand.vmem [shape: f32[8,8], index: 1, kind: input, shape index: {}]
  %s2 = inlined_call_operand.vmem [shape: f32[8,8], index: 2, kind: input, shape index: {}]
  %s3 = inlined_call_operand.vmem [shape: bf16[32,32], index: 3, kind: input, shape index: {}]
  %s4 = inlined_call_operand.vmem [shape: f32[1,32], index: 4, kind: input, shape index: {}]
  %s5 = inlined_call_operand.vmem [shape: f32[2,8,32], index: 5, kind: input, shape index: {}]
  %s6 = inlined_call_operand.vmem [shape: f32[2,8,32], index: 6, kind: output, shape index: {}]
  %s7 = sld [smem:[#allocation0]]
  $region57: #{gpt_forward.10} parent=0
    _
  %s9 = ssub.s32 1, %s7
  %s10 = scalar_select 0, %s9, %s7
  loop: start=0, step=1, limit=4
  $region2: #{gpt_forward.10} parent=0 // loop_pre_header
    _
  $region3: #{gpt_forward.10} parent=0 // loop_header
    %s12 = sphi 0, %s16
    %p13 = scmp.ge.s32.totalorder %s12, 4
    %s19 = sphi 0, %s31
    %s20 = sphi 0, %s27
    %s21 = sphi 0, %s19
    %s22 = sphi 0, %s20
    %s23 = sphi 0, %s21
    %s24 = sphi 0, %s22
    %s34 = sphi 0, %s36
    %s37 = sphi 0, %s34
    %s38 = sphi 0, %s37
    %s54 = sphi 0, %s38
    %s58 = sphi 0, %s58
    %s60 = sphi 0, %s58
    %s61 = sphi 0, %s60
    %s75 = sphi 0, %s61
    %s79 = sphi 0, %s79
    %s81 = sphi 0, %s79
    %s82 = sphi 0, %s81
    %s96 = sphi 0, %s82
    %s100 = sphi 0, %s100
    %s102 = sphi 0, %s100
    %s103 = sphi 0, %s102
    %s117 = sphi 0, %s103
    %s121 = sphi 0, %s121
    %s123 = sphi 0, %s121
    %s124 = sphi 0, %s123
    %s138 = sphi 0, %s124
    %s146 = sphi 0, %s148
    %s149 = sphi 0, %s146
    %s150 = sphi 0, %s149
    %s166 = sphi 0, %s150
    %s174 = sphi 0, %s176
    %s177 = sphi 0, %s174
    %s178 = sphi 0, %s177
    %s194 = sphi 0, %s178
  $region4: #{gpt_forward.10} parent=0 // loop_header_branch
    %15 = sbr.rel (%p13) target = $region8
  $region5: #{gpt_forward.10} parent=0 // loop_body
    %s17 = ssub.s32 %s12, 1
    %s18 = ssub.s32 %s12, 2
    %s25 = sadd.s32 1, %s20
    %p26 = scmp.ge.s32.totalorder %s25, 1
    %s27 = scalar_select %p26, 0, %s25
    %s28 = sadd.s32 1, %s19
    %s29 = scalar_select %p26, %s28, %s19
    %p30 = scmp.ge.s32.totalorder %s29, 2
    %s31 = scalar_select %p30, 0, %s29
    %s32 = ssub.s32 %s19, %s31
    %p33 = scmp.eq.s32.totalorder %s32, 0
    %s35 = sadd.s32 %s34, 1
    %s36 = scalar_select %p33, %s34, %s35
    %p39 = pneg %p33
    %p40 = scmp.eq.s32.totalorder %s12, 1
    %p41 = por %p39, %p40
    %p42 = scmp.ne.s32.totalorder %s34, %s37
    %p43 = scmp.eq.s32.totalorder %s12, 0
    %p44 = por %p42, %p43
    %p45 = scmp.ne.s32.totalorder %s34, %s37
    %p46 = scmp.eq.s32.totalorder %s17, 1
    %p47 = por %p45, %p46
    %p48 = scmp.ne.s32.totalorder %s37, %s38
    %p49 = scmp.eq.s32.totalorder %s17, 0
    %p50 = por %p48, %p49
    %p51 = scmp.ne.s32.totalorder %s37, %s38
    %p52 = scmp.eq.s32.totalorder %s18, 1
    %p53 = por %p51, %p52
    %p55 = scmp.ne.s32.totalorder %s38, %s54
    %p56 = scmp.eq.s32.totalorder %s18, 0
    %p57 = por %p55, %p56
    %s59 = sadd.s32 %s58, 1
    %p62 = scmp.eq.s32.totalorder %s12, 1
    %p63 = scmp.ne.s32.totalorder %s58, %s60
    %p64 = scmp.eq.s32.totalorder %s12, 0
    %p65 = por %p63, %p64
    %p66 = scmp.ne.s32.totalorder %s58, %s60
    %p67 = scmp.eq.s32.totalorder %s17, 1
    %p68 = por %p66, %p67
    %p69 = scmp.ne.s32.totalorder %s60, %s61
    %p70 = scmp.eq.s32.totalorder %s17, 0
    %p71 = por %p69, %p70
    %p72 = scmp.ne.s32.totalorder %s60, %s61
    %p73 = scmp.eq.s32.totalorder %s18, 1
    %p74 = por %p72, %p73
    %p76 = scmp.ne.s32.totalorder %s61, %s75
    %p77 = scmp.eq.s32.totalorder %s18, 0
    %p78 = por %p76, %p77
    %s80 = sadd.s32 %s79, 1
    %p83 = scmp.eq.s32.totalorder %s12, 1
    %p84 = scmp.ne.s32.totalorder %s79, %s81
    %p85 = scmp.eq.s32.totalorder %s12, 0
    %p86 = por %p84, %p85
    %p87 = scmp.ne.s32.totalorder %s79, %s81
    %p88 = scmp.eq.s32.totalorder %s17, 1
    %p89 = por %p87, %p88
    %p90 = scmp.ne.s32.totalorder %s81, %s82
    %p91 = scmp.eq.s32.totalorder %s17, 0
    %p92 = por %p90, %p91
    %p93 = scmp.ne.s32.totalorder %s81, %s82
    %p94 = scmp.eq.s32.totalorder %s18, 1
    %p95 = por %p93, %p94
    %p97 = scmp.ne.s32.totalorder %s82, %s96
    %p98 = scmp.eq.s32.totalorder %s18, 0
    %p99 = por %p97, %p98
    %s101 = sadd.s32 %s100, 1
    %p104 = scmp.eq.s32.totalorder %s12, 1
    %p105 = scmp.ne.s32.totalorder %s100, %s102
    %p106 = scmp.eq.s32.totalorder %s12, 0
    %p107 = por %p105, %p106
    %p108 = scmp.ne.s32.totalorder %s100, %s102
    %p109 = scmp.eq.s32.totalorder %s17, 1
    %p110 = por %p108, %p109
    %p111 = scmp.ne.s32.totalorder %s102, %s103
    %p112 = scmp.eq.s32.totalorder %s17, 0
    %p113 = por %p111, %p112
    %p114 = scmp.ne.s32.totalorder %s102, %s103
    %p115 = scmp.eq.s32.totalorder %s18, 1
    %p116 = por %p114, %p115
    %p118 = scmp.ne.s32.totalorder %s103, %s117
    %p119 = scmp.eq.s32.totalorder %s18, 0
    %p120 = por %p118, %p119
    %s122 = sadd.s32 %s121, 1
    %p125 = scmp.eq.s32.totalorder %s12, 1
    %p126 = scmp.ne.s32.totalorder %s121, %s123
    %p127 = scmp.eq.s32.totalorder %s12, 0
    %p128 = por %p126, %p127
    %p129 = scmp.ne.s32.totalorder %s121, %s123
    %p130 = scmp.eq.s32.totalorder %s17, 1
    %p131 = por %p129, %p130
    %p132 = scmp.ne.s32.totalorder %s123, %s124
    %p133 = scmp.eq.s32.totalorder %s17, 0
    %p134 = por %p132, %p133
    %p135 = scmp.ne.s32.totalorder %s123, %s124
    %p136 = scmp.eq.s32.totalorder %s18, 1
    %p137 = por %p135, %p136
    %p139 = scmp.ne.s32.totalorder %s124, %s138
    %p140 = scmp.eq.s32.totalorder %s18, 0
    %p141 = por %p139, %p140
    %s142 = ssub.s32 %s19, %s31
    %s143 = ssub.s32 %s20, %s27
    %s144 = sor.u32 %s142, %s143
    %p145 = scmp.eq.s32.totalorder %s144, 0
    %s147 = sadd.s32 %s146, 1
    %s148 = scalar_select %p145, %s146, %s147
    %p151 = pneg %p145
    %p152 = scmp.eq.s32.totalorder %s12, 1
    %p153 = por %p151, %p152
    %p154 = scmp.ne.s32.totalorder %s146, %s149
    %p155 = scmp.eq.s32.totalorder %s12, 0
    %p156 = por %p154, %p155
    %p157 = scmp.ne.s32.totalorder %s146, %s149
    %p158 = scmp.eq.s32.totalorder %s17, 1
    %p159 = por %p157, %p158
    %p160 = scmp.ne.s32.totalorder %s149, %s150
    %p161 = scmp.eq.s32.totalorder %s17, 0
    %p162 = por %p160, %p161
    %p163 = scmp.ne.s32.totalorder %s149, %s150
    %p164 = scmp.eq.s32.totalorder %s18, 1
    %p165 = por %p163, %p164
    %p167 = scmp.ne.s32.totalorder %s150, %s166
    %p168 = scmp.eq.s32.totalorder %s18, 0
    %p169 = por %p167, %p168
    %s170 = ssub.s32 %s19, %s31
    %s171 = ssub.s32 %s20, %s27
    %s172 = sor.u32 %s170, %s171
    %p173 = scmp.eq.s32.totalorder %s172, 0
    %s175 = sadd.s32 %s174, 1
    %s176 = scalar_select %p173, %s174, %s175
    %p179 = pneg %p173
    %p180 = scmp.eq.s32.totalorder %s12, 1
    %p181 = por %p179, %p180
    %p182 = scmp.ne.s32.totalorder %s174, %s177
    %p183 = scmp.eq.s32.totalorder %s12, 0
    %p184 = por %p182, %p183
    %p185 = scmp.ne.s32.totalorder %s174, %s177
    %p186 = scmp.eq.s32.totalorder %s17, 1
    %p187 = por %p185, %p186
    %p188 = scmp.ne.s32.totalorder %s177, %s178
    %p189 = scmp.eq.s32.totalorder %s17, 0
    %p190 = por %p188, %p189
    %p191 = scmp.ne.s32.totalorder %s177, %s178
    %p192 = scmp.eq.s32.totalorder %s18, 1
    %p193 = por %p191, %p192
    %p195 = scmp.ne.s32.totalorder %s178, %s194
    %p196 = scmp.eq.s32.totalorder %s18, 0
    %p197 = por %p195, %p196
    %p198 = scmp.le.s32.totalorder 1, %s12
    %p199 = scmp.lt.s32.totalorder %s12, 3
    %p200 = pnand %p198, %p199
    %p201 = pneg %p200
    // Predicated region
    $region9: #{gpt_forward.10} parent=5 // pred_check
      _
    $region10: #{gpt_forward.10} parent=5 // pred_check_branch
      %203 = sbr.rel (%p200) target = $region12
    $region11: #{gpt_forward.10} parent=5 // pred_region
      %s204 = ssub.s32 %s12, 1
      // Predicated region
      $region13: #{gpt_forward.10} parent=11 // pred_check
        %p205 = pneg %p71
      $region14: #{gpt_forward.10} parent=11 // pred_check_branch
        %207 = sbr.rel (%p205) target = $region16
      $region15: #{gpt_forward.10} parent=11 // pred_region
        _
      $region16: #{gpt_forward.10} parent=11 // pred_fallthru
        _
      // Predicated region
      $region17: #{gpt_forward.10} parent=11 // pred_check
        %p208 = pneg %p92
      $region18: #{gpt_forward.10} parent=11 // pred_check_branch
        %210 = sbr.rel (%p208) target = $region20
      $region19: #{gpt_forward.10} parent=11 // pred_region
        _
      $region20: #{gpt_forward.10} parent=11 // pred_fallthru
        _
      // Predicated region
      $region21: #{gpt_forward.10} parent=11 // pred_check
        %p211 = pneg %p113
      $region22: #{gpt_forward.10} parent=11 // pred_check_branch
        %213 = sbr.rel (%p211) target = $region24
      $region23: #{gpt_forward.10} parent=11 // pred_region
        _
      $region24: #{gpt_forward.10} parent=11 // pred_fallthru
        _
      // Predicated region
      $region25: #{gpt_forward.10} parent=11 // pred_check
        %p214 = pneg %p134
      $region26: #{gpt_forward.10} parent=11 // pred_check_branch
        %216 = sbr.rel (%p214) target = $region28
      $region27: #{gpt_forward.10} parent=11 // pred_region
        _
      $region28: #{gpt_forward.10} parent=11 // pred_fallthru
        _
    $region12: #{gpt_forward.10} parent=5 // pred_fallthru
      _
    %p217 = scmp.lt.s32.totalorder %s12, 2
    // Predicated region
    $region29: #{gpt_forward.10} parent=5 // pred_check
      %p218 = pneg %p217
    $region30: #{gpt_forward.10} parent=5 // pred_check_branch
      %220 = sbr.rel (%p218) target = $region32
    $region31: #{gpt_forward.10} parent=5 // pred_region
      // Predicated region
      $region33: #{gpt_forward.10} parent=31 // pred_check
        %p221 = pneg %p44
      $region34: #{gpt_forward.10} parent=31 // pred_check_branch
        %223 = sbr.rel (%p221) target = $region36
      $region35: #{gpt_forward.10} parent=31 // pred_region
        %p224 = scmp.lt.s32.totalorder %s19, 1
        %s225 = scalar_select %p224, %s19, 1
        %s226 = smul.addr %s225, 8
        %s227 = scalar_lea.vmem %s0, %s226
      $region36: #{gpt_forward.10} parent=31 // pred_fallthru
        _
      // Predicated region
      $region37: #{gpt_forward.10} parent=31 // pred_check
        %p228 = pneg %p156
      $region38: #{gpt_forward.10} parent=31 // pred_check_branch
        %230 = sbr.rel (%p228) target = $region40
      $region39: #{gpt_forward.10} parent=31 // pred_region
        %p231 = scmp.lt.s32.totalorder %s19, 1
        %s232 = scalar_select %p231, %s19, 1
        %p233 = scmp.lt.s32.totalorder %s20, 0
        %s234 = scalar_select %p233, %s20, 0
        %s235 = sadd.s32 %s234, %s232
        %s236 = smul.addr %s235, 8
        %s237 = scalar_lea.vmem %s5, %s236
      $region40: #{gpt_forward.10} parent=31 // pred_fallthru
        _
    $region32: #{gpt_forward.10} parent=5 // pred_fallthru
      _
    %p238 = scmp.le.s32.totalorder 1, %s12
    %p239 = scmp.lt.s32.totalorder %s12, 3
    %p240 = pnand %p238, %p239
    %p241 = pneg %p240
    // Predicated region
    $region41: #{gpt_forward.10} parent=5 // pred_check
      _
    $region42: #{gpt_forward.10} parent=5 // pred_check_branch
      %243 = sbr.rel (%p240) target = $region44
    $region43: #{gpt_forward.10} parent=5 // pred_region
      %s244 = ssub.s32 %s12, 1
      %p245 = scmp.lt.s32.totalorder %s21, 1
      %s246 = scalar_select %p245, %s21, 1
      %s247 = smul.addr %s246, 8
      %s248 = scalar_lea.vmem %s0, %s247
      %p249 = pneg %p50
      %p250 = pneg %p47
      %p251 = pneg %p71
      %p252 = pneg %p68
      %p253 = pneg %p92
      %p254 = pneg %p89
      %p255 = pneg %p113
      %p256 = pneg %p110
      %p257 = pneg %p134
      %p258 = pneg %p131
      %p259 = scmp.lt.s32.totalorder %s21, 1
      %s260 = scalar_select %p259, %s21, 1
      %p261 = scmp.lt.s32.totalorder %s22, 0
      %s262 = scalar_select %p261, %s22, 0
      %s263 = sadd.s32 %s262, %s260
      %s264 = smul.addr %s263, 8
      %s265 = scalar_lea.vmem %s5, %s264
      %p266 = pneg %p162
      %p267 = pneg %p159
      %p268 = pneg %p190
      %p269 = pneg %p187
      %p270 = scmp.lt.s32.totalorder %s21, 1
      %s271 = scalar_select %p270, %s21, 1
      %p272 = scmp.lt.s32.totalorder %s22, 0
      %s273 = scalar_select %p272, %s22, 0
      %s274 = sadd.s32 %s273, %s271
      %s275 = smul.addr %s274, 8
      %s276 = scalar_lea.vmem %s6, %s275
      %p277 = scmp.lt.s32.totalorder %s21, 1
      %s278 = scalar_select %p277, %s21, 1
      %s279 = smul.addr %s278, 8
      %s280 = scalar_lea.vmem %s0, %s279
      %p281 = scmp.lt.s32.totalorder %s21, 1
      %s282 = scalar_select %p281, %s21, 1
      %p283 = scmp.lt.s32.totalorder %s22, 0
      %s284 = scalar_select %p283, %s22, 0
      %s285 = sadd.s32 %s284, %s282
      %s286 = smul.addr %s285, 8
      %s287 = scalar_lea.vmem %s5, %s286
      %p288 = scmp.lt.s32.totalorder %s21, 1
      %s289 = scalar_select %p288, %s21, 1
      %p290 = scmp.lt.s32.totalorder %s22, 0
      %s291 = scalar_select %p290, %s22, 0
      %s292 = sadd.s32 %s291, %s289
      %s293 = smul.addr %s292, 8
      %s294 = scalar_lea.vmem %s6, %s293
      %v296 = vld [vmem:[%s280] sm:$0xff]
      %298 = vrot.lane.b32.xlu0 %v296, 104
      %v299 = vpop.permute.xlu0 %298
      %301 = vrot.lane.b32.xlu0 %v296, 80
      %v302 = vpop.permute.xlu0 %301
      %304 = vrot.lane.b32.xlu0 %v296, 56
      %v305 = vpop.permute.xlu0 %304
      %v307 = vld [vmem:[%s1] sm:$0xff]
      %v308 = vld [vmem:[%s2] sm:$0xff]
      %v309 = vmul.f32 %v296, %v307
      %v310 = vmul.f32 %v299, %v307
      %v311 = vmul.f32 %v302, %v307
      %v312 = vmul.f32 %v305, %v307
      %314 = vrot.lane.b32.xlu0 %v308, 4
      %v315 = vpop.permute.xlu0 %314
      %v317 = vmul.f32 %v296, %v315
      %v318 = vmul.f32 %v299, %v315
      %v319 = vmul.f32 %v302, %v315
      %v320 = vmul.f32 %v305, %v315
      %325 = vrot.lane.b32.xlu0 %v317, 124
      %v326 = vpop.permute.xlu0 %325
      %327 = vrot.lane.b32.xlu0 %v318, 124
      %v328 = vpop.permute.xlu0 %327
      %329 = vrot.lane.b32.xlu0 %v319, 124
      %v330 = vpop.permute.xlu0 %329
      %331 = vrot.lane.b32.xlu0 %v320, 124
      %v332 = vpop.permute.xlu0 %331
      %v337 = vsub.f32 %v309, %v326
      %v338 = vsub.f32 %v310, %v328
      %v339 = vsub.f32 %v311, %v330
      %v340 = vsub.f32 %v312, %v332
      %341 = vrot.lane.b32.xlu0 %v308, 124
      %v342 = vpop.permute.xlu0 %341
      %v344 = vmul.f32 %v296, %v342
      %v345 = vmul.f32 %v299, %v342
      %v346 = vmul.f32 %v302, %v342
      %v347 = vmul.f32 %v305, %v342
      %352 = vrot.lane.b32.xlu0 %v344, 4
      %v353 = vpop.permute.xlu0 %352
      %354 = vrot.lane.b32.xlu0 %v345, 4
      %v355 = vpop.permute.xlu0 %354
      %356 = vrot.lane.b32.xlu0 %v346, 4
      %v357 = vpop.permute.xlu0 %356
      %358 = vrot.lane.b32.xlu0 %v347, 4
      %v359 = vpop.permute.xlu0 %358
      %v364 = vadd.f32 %v309, %v353
      %v365 = vadd.f32 %v310, %v355
      %v366 = vadd.f32 %v311, %v357
      %v367 = vadd.f32 %v312, %v359
      %369 = vrot.lane.b32.xlu0 %v307, 8
      %v370 = vpop.permute.xlu0 %369
      %v372 = vmul.f32 %v296, %v370
      %v373 = vmul.f32 %v299, %v370
      %v374 = vmul.f32 %v302, %v370
      %v375 = vmul.f32 %v305, %v370
      %376 = vrot.lane.b32.xlu0 %v308, 12
      %v377 = vpop.permute.xlu0 %376
      %v379 = vmul.f32 %v296, %v377
      %v380 = vmul.f32 %v299, %v377
      %v381 = vmul.f32 %v302, %v377
      %v382 = vmul.f32 %v305, %v377
      %387 = vrot.lane.b32.xlu0 %v379, 124
      %v388 = vpop.permute.xlu0 %387
      %389 = vrot.lane.b32.xlu0 %v380, 124
      %v390 = vpop.permute.xlu0 %389
      %391 = vrot.lane.b32.xlu0 %v381, 124
      %v392 = vpop.permute.xlu0 %391
      %393 = vrot.lane.b32.xlu0 %v382, 124
      %v394 = vpop.permute.xlu0 %393
      %v399 = vsub.f32 %v372, %v388
      %v400 = vsub.f32 %v373, %v390
      %v401 = vsub.f32 %v374, %v392
      %v402 = vsub.f32 %v375, %v394
      %403 = vrot.lane.b32.xlu0 %v317, 4
      %v404 = vpop.permute.xlu0 %403
      %405 = vrot.lane.b32.xlu0 %v318, 4
      %v406 = vpop.permute.xlu0 %405
      %407 = vrot.lane.b32.xlu0 %v319, 4
      %v408 = vpop.permute.xlu0 %407
      %409 = vrot.lane.b32.xlu0 %v320, 4
      %v410 = vpop.permute.xlu0 %409
      %v415 = vadd.f32 %v372, %v404
      %v416 = vadd.f32 %v373, %v406
      %v417 = vadd.f32 %v374, %v408
      %v418 = vadd.f32 %v375, %v410
      %v419 = vpack.c.bf16 %v337, %v337
      %v420 = vpack.c.bf16 %v338, %v338
      %v421 = vpack.c.bf16 %v339, %v339
      %v422 = vpack.c.bf16 %v340, %v340
      %v423 = vpack.c.bf16 %v399, %v399
      %v424 = vpack.c.bf16 %v400, %v400
      %v425 = vpack.c.bf16 %v401, %v401
      %v426 = vpack.c.bf16 %v402, %v402
      %v427 = vpack.c.bf16 %v364, %v364
      %v428 = vpack.c.bf16 %v365, %v365
      %v429 = vpack.c.bf16 %v366, %v366
      %v430 = vpack.c.bf16 %v367, %v367
      %v431 = vpack.c.bf16 %v415, %v415
      %v432 = vpack.c.bf16 %v416, %v416
      %v433 = vpack.c.bf16 %v417, %v417
      %v434 = vpack.c.bf16 %v418, %v418
      %436 = vrot.lane.b32.xlu0 %v427, 124
      %v437 = vpop.permute.xlu0 %436
      %439 = vrot.lane.b32.xlu0 %v431, 116
      %v440 = vpop.permute.xlu0 %439
      %vm441 = vcmask 31744
      %v443 = vsel %vm441, %v437, 0
      %v446 = vsel %vm441, %v440, 0
      %448 = vmatprep.subr.bf16.mxu0 0
      %449 = vmatpush1.bf16.xpose.msra.mxu0 0
      %450 = vmatprep.subr.bf16.mxu0 0
      %451 = vmatpush1.bf16.xpose.msra.mxu0 0
      %452 = vmatprep.subr.bf16.mxu0 0
      %453 = vmatpush1.bf16.xpose.msra.mxu0 0
      %454 = vmatprep.subr.bf16.mxu0 0
      %455 = vmatpush1.bf16.xpose.msra.mxu0 0
      %456 = vmatprep.subr.bf16.mxu0 0
      %457 = vmatpush1.bf16.xpose.msra.mxu0 0
      %458 = vmatprep.subr.bf16.mxu0 0
      %459 = vmatpush1.bf16.xpose.msra.mxu0 0
      %460 = vmatprep.subr.bf16.mxu0 0
      %461 = vmatpush1.bf16.xpose.msra.mxu0 0
      %462 = vmatprep.subr.bf16.mxu0 0
      %463 = vmatpush1.bf16.xpose.msra.mxu0 %v446
      %464 = vmatprep.subr.bf16.mxu0 0
      %465 = vmatpush2.bf16.xpose.msra.mxu0 0
      %466 = vmatprep.subr.bf16.mxu0 0
      %467 = vmatpush2.bf16.xpose.msra.mxu0 0
      %468 = vmatprep.subr.bf16.mxu0 0
      %469 = vmatpush2.bf16.xpose.msra.mxu0 0
      %470 = vmatprep.subr.bf16.mxu0 0
      %471 = vmatpush2.bf16.xpose.msra.mxu0 0
      %472 = vmatprep.subr.bf16.mxu0 0
      %473 = vmatpush2.bf16.xpose.msra.mxu0 0
      %474 = vmatprep.subr.bf16.mxu0 0
      %475 = vmatpush2.bf16.xpose.msra.mxu0 0
      %476 = vmatprep.subr.bf16.mxu0 0
      %477 = vmatpush2.bf16.xpose.msra.mxu0 0
      %478 = vmatprep.subr.bf16.mxu0 0
      %479 = vmatpush2.bf16.xpose.msra.mxu0 0
      %480 = vmatprep.mubr.bf16.mxu0 0
      %481 = vmatmul.mubr.bf16.gmra.mxu0 %v443
      %v482 = vpop.f32.mrf.mxu0
      %v483 = vadd.f32 0.0, %v482
      %v484 = vpop.f32.mrf.mxu0
      %v485 = vpop.f32.mrf.mxu0
      %v486 = vpop.f32.mrf.mxu0
      %487 = vdwg.mxu0
      %489 = vrot.lane.b32.xlu0 %v428, 124
      %v490 = vpop.permute.xlu0 %489
      %492 = vrot.lane.b32.xlu0 %v432, 116
      %v493 = vpop.permute.xlu0 %492
      %v495 = vsel %vm441, %v490, 0
      %v498 = vsel %vm441, %v493, 0
      %500 = vmatprep.subr.bf16.mxu0 0
      %501 = vmatpush1.bf16.xpose.msra.mxu0 0
      %502 = vmatprep.subr.bf16.mxu0 0
      %503 = vmatpush1.bf16.xpose.msra.mxu0 0
      %504 = vmatprep.subr.bf16.mxu0 0
      %505 = vmatpush1.bf16.xpose.msra.mxu0 0
      %506 = vmatprep.subr.bf16.mxu0 0
      %507 = vmatpush1.bf16.xpose.msra.mxu0 0
      %508 = vmatprep.subr.bf16.mxu0 0
      %509 = vmatpush1.bf16.xpose.msra.mxu0 0
      %510 = vmatprep.subr.bf16.mxu0 0
      %511 = vmatpush1.bf16.xpose.msra.mxu0 0
      %512 = vmatprep.subr.bf16.mxu0 0
      %513 = vmatpush1.bf16.xpose.msra.mxu0 0
      %514 = vmatprep.subr.bf16.mxu0 0
      %515 = vmatpush1.bf16.xpose.msra.mxu0 %v498
      %516 = vmatprep.subr.bf16.mxu0 0
      %517 = vmatpush2.bf16.xpose.msra.mxu0 0
      %518 = vmatprep.subr.bf16.mxu0 0
      %519 = vmatpush2.bf16.xpose.msra.mxu0 0
      %520 = vmatprep.subr.bf16.mxu0 0
      %521 = vmatpush2.bf16.xpose.msra.mxu0 0
      %522 = vmatprep.subr.bf16.mxu0 0
      %523 = vmatpush2.bf16.xpose.msra.mxu0 0
      %524 = vmatprep.subr.bf16.mxu0 0
      %525 = vmatpush2.bf16.xpose.msra.mxu0 0
      %526 = vmatprep.subr.bf16.mxu0 0
      %527 = vmatpush2.bf16.xpose.msra.mxu0 0
      %528 = vmatprep.subr.bf16.mxu0 0
      %529 = vmatpush2.bf16.xpose.msra.mxu0 0
      %530 = vmatprep.subr.bf16.mxu0 0
      %531 = vmatpush2.bf16.xpose.msra.mxu0 0
      %532 = vmatprep.mubr.bf16.mxu0 0
      %533 = vmatmul.mubr.bf16.gmra.mxu0 %v495
      %v534 = vpop.f32.mrf.mxu0
      %v535 = vadd.f32 0.0, %v534
      %v536 = vpop.f32.mrf.mxu0
      %v537 = vpop.f32.mrf.mxu0
      %v538 = vpop.f32.mrf.mxu0
      %539 = vdwg.mxu0
      %541 = vrot.lane.b32.xlu0 %v429, 124
      %v542 = vpop.permute.xlu0 %541
      %544 = vrot.lane.b32.xlu0 %v433, 116
      %v545 = vpop.permute.xlu0 %544
      %v547 = vsel %vm441, %v542, 0
      %v550 = vsel %vm441, %v545, 0
      %552 = vmatprep.subr.bf16.mxu0 0
      %553 = vmatpush1.bf16.xpose.msra.mxu0 0
      %554 = vmatprep.subr.bf16.mxu0 0
      %555 = vmatpush1.bf16.xpose.msra.mxu0 0
      %556 = vmatprep.subr.bf16.mxu0 0
      %557 = vmatpush1.bf16.xpose.msra.mxu0 0
      %558 = vmatprep.subr.bf16.mxu0 0
      %559 = vmatpush1.bf16.xpose.msra.mxu0 0
      %560 = vmatprep.subr.bf16.mxu0 0
      %561 = vmatpush1.bf16.xpose.msra.mxu0 0
      %562 = vmatprep.subr.bf16.mxu0 0
      %563 = vmatpush1.bf16.xpose.msra.mxu0 0
      %564 = vmatprep.subr.bf16.mxu0 0
      %565 = vmatpush1.bf16.xpose.msra.mxu0 0
      %566 = vmatprep.subr.bf16.mxu0 0
      %567 = vmatpush1.bf16.xpose.msra.mxu0 %v550
      %568 = vmatprep.subr.bf16.mxu0 0
      %569 = vmatpush2.bf16.xpose.msra.mxu0 0
      %570 = vmatprep.subr.bf16.mxu0 0
      %571 = vmatpush2.bf16.xpose.msra.mxu0 0
      %572 = vmatprep.subr.bf16.mxu0 0
      %573 = vmatpush2.bf16.xpose.msra.mxu0 0
      %574 = vmatprep.subr.bf16.mxu0 0
      %575 = vmatpush2.bf16.xpose.msra.mxu0 0
      %576 = vmatprep.subr.bf16.mxu0 0
      %577 = vmatpush2.bf16.xpose.msra.mxu0 0
      %578 = vmatprep.subr.bf16.mxu0 0
      %579 = vmatpush2.bf16.xpose.msra.mxu0 0
      %580 = vmatprep.subr.bf16.mxu0 0
      %581 = vmatpush2.bf16.xpose.msra.mxu0 0
      %582 = vmatprep.subr.bf16.mxu0 0
      %583 = vmatpush2.bf16.xpose.msra.mxu0 0
      %584 = vmatprep.mubr.bf16.mxu0 0
      %585 = vmatmul.mubr.bf16.gmra.mxu0 %v547
      %v586 = vpop.f32.mrf.mxu0
      %v587 = vadd.f32 0.0, %v586
      %v588 = vpop.f32.mrf.mxu0
      %v589 = vpop.f32.mrf.mxu0
      %v590 = vpop.f32.mrf.mxu0
      %591 = vdwg.mxu0
      %593 = vrot.lane.b32.xlu0 %v430, 124
      %v594 = vpop.permute.xlu0 %593
      %596 = vrot.lane.b32.xlu0 %v434, 116
      %v597 = vpop.permute.xlu0 %596
      %v599 = vsel %vm441, %v594, 0
      %v602 = vsel %vm441, %v597, 0
      %604 = vmatprep.subr.bf16.mxu0 0
      %605 = vmatpush1.bf16.xpose.msra.mxu0 0
      %606 = vmatprep.subr.bf16.mxu0 0
      %607 = vmatpush1.bf16.xpose.msra.mxu0 0
      %608 = vmatprep.subr.bf16.mxu0 0
      %609 = vmatpush1.bf16.xpose.msra.mxu0 0
      %610 = vmatprep.subr.bf16.mxu0 0
      %611 = vmatpush1.bf16.xpose.msra.mxu0 0
      %612 = vmatprep.subr.bf16.mxu0 0
      %613 = vmatpush1.bf16.xpose.msra.mxu0 0
      %614 = vmatprep.subr.bf16.mxu0 0
      %615 = vmatpush1.bf16.xpose.msra.mxu0 0
      %616 = vmatprep.subr.bf16.mxu0 0
      %617 = vmatpush1.bf16.xpose.msra.mxu0 0
      %618 = vmatprep.subr.bf16.mxu0 0
      %619 = vmatpush1.bf16.xpose.msra.mxu0 %v602
      %620 = vmatprep.subr.bf16.mxu0 0
      %621 = vmatpush2.bf16.xpose.msra.mxu0 0
      %622 = vmatprep.subr.bf16.mxu0 0
      %623 = vmatpush2.bf16.xpose.msra.mxu0 0
      %624 = vmatprep.subr.bf16.mxu0 0
      %625 = vmatpush2.bf16.xpose.msra.mxu0 0
      %626 = vmatprep.subr.bf16.mxu0 0
      %627 = vmatpush2.bf16.xpose.msra.mxu0 0
      %628 = vmatprep.subr.bf16.mxu0 0
      %629 = vmatpush2.bf16.xpose.msra.mxu0 0
      %630 = vmatprep.subr.bf16.mxu0 0
      %631 = vmatpush2.bf16.xpose.msra.mxu0 0
      %632 = vmatprep.subr.bf16.mxu0 0
      %633 = vmatpush2.bf16.xpose.msra.mxu0 0
      %634 = vmatprep.subr.bf16.mxu0 0
      %635 = vmatpush2.bf16.xpose.msra.mxu0 0
      %636 = vmatprep.mubr.bf16.mxu0 0
      %637 = vmatmul.mubr.bf16.gmra.mxu0 %v599
      %v638 = vpop.f32.mrf.mxu0
      %v639 = vadd.f32 0.0, %v638
      %v640 = vpop.f32.mrf.mxu0
      %v641 = vpop.f32.mrf.mxu0
      %v642 = vpop.f32.mrf.mxu0
      %643 = vdwg.mxu0
      %645 = vrot.lane.b32.xlu0 %v423, 120
      %v646 = vpop.permute.xlu0 %645
      %v648 = vsel %vm441, %v419, 0
      %v651 = vsel %vm441, %v646, 0
      %653 = vmatprep.subr.bf16.mxu0 0
      %654 = vmatpush1.bf16.xpose.msra.mxu0 0
      %655 = vmatprep.subr.bf16.mxu0 0
      %656 = vmatpush1.bf16.xpose.msra.mxu0 0
      %657 = vmatprep.subr.bf16.mxu0 0
      %658 = vmatpush1.bf16.xpose.msra.mxu0 0
      %659 = vmatprep.subr.bf16.mxu0 0
      %660 = vmatpush1.bf16.xpose.msra.mxu0 0
      %661 = vmatprep.subr.bf16.mxu0 0
      %662 = vmatpush1.bf16.xpose.msra.mxu0 0
      %663 = vmatprep.subr.bf16.mxu0 0
      %664 = vmatpush1.bf16.xpose.msra.mxu0 0
      %665 = vmatprep.subr.bf16.mxu0 0
      %666 = vmatpush1.bf16.xpose.msra.mxu0 0
      %667 = vmatprep.subr.bf16.mxu0 0
      %668 = vmatpush1.bf16.xpose.msra.mxu0 %v651
      %669 = vmatprep.subr.bf16.mxu0 0
      %670 = vmatpush2.bf16.xpose.msra.mxu0 0
      %671 = vmatprep.subr.bf16.mxu0 0
      %672 = vmatpush2.bf16.xpose.msra.mxu0 0
      %673 = vmatprep.subr.bf16.mxu0 0
      %674 = vmatpush2.bf16.xpose.msra.mxu0 0
      %675 = vmatprep.subr.bf16.mxu0 0
      %676 = vmatpush2.bf16.xpose.msra.mxu0 0
      %677 = vmatprep.subr.bf16.mxu0 0
      %678 = vmatpush2.bf16.xpose.msra.mxu0 0
      %679 = vmatprep.subr.bf16.mxu0 0
      %680 = vmatpush2.bf16.xpose.msra.mxu0 0
      %681 = vmatprep.subr.bf16.mxu0 0
      %682 = vmatpush2.bf16.xpose.msra.mxu0 0
      %683 = vmatprep.subr.bf16.mxu0 0
      %684 = vmatpush2.bf16.xpose.msra.mxu0 0
      %685 = vmatprep.mubr.bf16.mxu0 0
      %686 = vmatmul.mubr.bf16.gmra.mxu0 %v648
      %v687 = vpop.f32.mrf.mxu0
      %v688 = vadd.f32 %v483, %v687
      %v689 = vpop.f32.mrf.mxu0
      %v690 = vpop.f32.mrf.mxu0
      %v691 = vpop.f32.mrf.mxu0
      %692 = vdwg.mxu0
      %694 = vrot.lane.b32.xlu0 %v424, 120
      %v695 = vpop.permute.xlu0 %694
      %v697 = vsel %vm441, %v420, 0
      %v700 = vsel %vm441, %v695, 0
      %702 = vmatprep.subr.bf16.mxu0 0
      %703 = vmatpush1.bf16.xpose.msra.mxu0 0
      %704 = vmatprep.subr.bf16.mxu0 0
      %705 = vmatpush1.bf16.xpose.msra.mxu0 0
      %706 = vmatprep.subr.bf16.mxu0 0
      %707 = vmatpush1.bf16.xpose.msra.mxu0 0
      %708 = vmatprep.subr.bf16.mxu0 0
      %709 = vmatpush1.bf16.xpose.msra.mxu0 0
      %710 = vmatprep.subr.bf16.mxu0 0
      %711 = vmatpush1.bf16.xpose.msra.mxu0 0
      %712 = vmatprep.subr.bf16.mxu0 0
      %713 = vmatpush1.bf16.xpose.msra.mxu0 0
      %714 = vmatprep.subr.bf16.mxu0 0
      %715 = vmatpush1.bf16.xpose.msra.mxu0 0
      %716 = vmatprep.subr.bf16.mxu0 0
      %717 = vmatpush1.bf16.xpose.msra.mxu0 %v700
      %718 = vmatprep.subr.bf16.mxu0 0
      %719 = vmatpush2.bf16.xpose.msra.mxu0 0
      %720 = vmatprep.subr.bf16.mxu0 0
      %721 = vmatpush2.bf16.xpose.msra.mxu0 0
      %722 = vmatprep.subr.bf16.mxu0 0
      %723 = vmatpush2.bf16.xpose.msra.mxu0 0
      %724 = vmatprep.subr.bf16.mxu0 0
      %725 = vmatpush2.bf16.xpose.msra.mxu0 0
      %726 = vmatprep.subr.bf16.mxu0 0
      %727 = vmatpush2.bf16.xpose.msra.mxu0 0
      %728 = vmatprep.subr.bf16.mxu0 0
      %729 = vmatpush2.bf16.xpose.msra.mxu0 0
      %730 = vmatprep.subr.bf16.mxu0 0
      %731 = vmatpush2.bf16.xpose.msra.mxu0 0
      %732 = vmatprep.subr.bf16.mxu0 0
      %733 = vmatpush2.bf16.xpose.msra.mxu0 0
      %734 = vmatprep.mubr.bf16.mxu0 0
      %735 = vmatmul.mubr.bf16.gmra.mxu0 %v697
      %v736 = vpop.f32.mrf.mxu0
      %v737 = vadd.f32 %v535, %v736
      %v738 = vpop.f32.mrf.mxu0
      %v739 = vpop.f32.mrf.mxu0
      %v740 = vpop.f32.mrf.mxu0
      %741 = vdwg.mxu0
      %743 = vrot.lane.b32.xlu0 %v425, 120
      %v744 = vpop.permute.xlu0 %743
      %v746 = vsel %vm441, %v421, 0
      %v749 = vsel %vm441, %v744, 0
      %751 = vmatprep.subr.bf16.mxu0 0
      %752 = vmatpush1.bf16.xpose.msra.mxu0 0
      %753 = vmatprep.subr.bf16.mxu0 0
      %754 = vmatpush1.bf16.xpose.msra.mxu0 0
      %755 = vmatprep.subr.bf16.mxu0 0
      %756 = vmatpush1.bf16.xpose.msra.mxu0 0
      %757 = vmatprep.subr.bf16.mxu0 0
      %758 = vmatpush1.bf16.xpose.msra.mxu0 0
      %759 = vmatprep.subr.bf16.mxu0 0
      %760 = vmatpush1.bf16.xpose.msra.mxu0 0
      %761 = vmatprep.subr.bf16.mxu0 0
      %762 = vmatpush1.bf16.xpose.msra.mxu0 0
      %763 = vmatprep.subr.bf16.mxu0 0
      %764 = vmatpush1.bf16.xpose.msra.mxu0 0
      %765 = vmatprep.subr.bf16.mxu0 0
      %766 = vmatpush1.bf16.xpose.msra.mxu0 %v749
      %767 = vmatprep.subr.bf16.mxu0 0
      %768 = vmatpush2.bf16.xpose.msra.mxu0 0
      %769 = vmatprep.subr.bf16.mxu0 0
      %770 = vmatpush2.bf16.xpose.msra.mxu0 0
      %771 = vmatprep.subr.bf16.mxu0 0
      %772 = vmatpush2.bf16.xpose.msra.mxu0 0
      %773 = vmatprep.subr.bf16.mxu0 0
      %774 = vmatpush2.bf16.xpose.msra.mxu0 0
      %775 = vmatprep.subr.bf16.mxu0 0
      %776 = vmatpush2.bf16.xpose.msra.mxu0 0
      %777 = vmatprep.subr.bf16.mxu0 0
      %778 = vmatpush2.bf16.xpose.msra.mxu0 0
      %779 = vmatprep.subr.bf16.mxu0 0
      %780 = vmatpush2.bf16.xpose.msra.mxu0 0
      %781 = vmatprep.subr.bf16.mxu0 0
      %782 = vmatpush2.bf16.xpose.msra.mxu0 0
      %783 = vmatprep.mubr.bf16.mxu0 0
      %784 = vmatmul.mubr.bf16.gmra.mxu0 %v746
      %v785 = vpop.f32.mrf.mxu0
      %v786 = vadd.f32 %v587, %v785
      %v787 = vpop.f32.mrf.mxu0
      %v788 = vpop.f32.mrf.mxu0
      %v789 = vpop.f32.mrf.mxu0
      %790 = vdwg.mxu0
      %792 = vrot.lane.b32.xlu0 %v426, 120
      %v793 = vpop.permute.xlu0 %792
      %v795 = vsel %vm441, %v422, 0
      %v798 = vsel %vm441, %v793, 0
      %800 = vmatprep.subr.bf16.mxu0 0
      %801 = vmatpush1.bf16.xpose.msra.mxu0 0
      %802 = vmatprep.subr.bf16.mxu0 0
      %803 = vmatpush1.bf16.xpose.msra.mxu0 0
      %804 = vmatprep.subr.bf16.mxu0 0
      %805 = vmatpush1.bf16.xpose.msra.mxu0 0
      %806 = vmatprep.subr.bf16.mxu0 0
      %807 = vmatpush1.bf16.xpose.msra.mxu0 0
      %808 = vmatprep.subr.bf16.mxu0 0
      %809 = vmatpush1.bf16.xpose.msra.mxu0 0
      %810 = vmatprep.subr.bf16.mxu0 0
      %811 = vmatpush1.bf16.xpose.msra.mxu0 0
      %812 = vmatprep.subr.bf16.mxu0 0
      %813 = vmatpush1.bf16.xpose.msra.mxu0 0
      %814 = vmatprep.subr.bf16.mxu0 0
      %815 = vmatpush1.bf16.xpose.msra.mxu0 %v798
      %816 = vmatprep.subr.bf16.mxu0 0
      %817 = vmatpush2.bf16.xpose.msra.mxu0 0
      %818 = vmatprep.subr.bf16.mxu0 0
      %819 = vmatpush2.bf16.xpose.msra.mxu0 0
      %820 = vmatprep.subr.bf16.mxu0 0
      %821 = vmatpush2.bf16.xpose.msra.mxu0 0
      %822 = vmatprep.subr.bf16.mxu0 0
      %823 = vmatpush2.bf16.xpose.msra.mxu0 0
      %824 = vmatprep.subr.bf16.mxu0 0
      %825 = vmatpush2.bf16.xpose.msra.mxu0 0
      %826 = vmatprep.subr.bf16.mxu0 0
      %827 = vmatpush2.bf16.xpose.msra.mxu0 0
      %828 = vmatprep.subr.bf16.mxu0 0
      %829 = vmatpush2.bf16.xpose.msra.mxu0 0
      %830 = vmatprep.subr.bf16.mxu0 0
      %831 = vmatpush2.bf16.xpose.msra.mxu0 0
      %832 = vmatprep.mubr.bf16.mxu0 0
      %833 = vmatmul.mubr.bf16.gmra.mxu0 %v795
      %v834 = vpop.f32.mrf.mxu0
      %v835 = vadd.f32 %v639, %v834
      %v836 = vpop.f32.mrf.mxu0
      %v837 = vpop.f32.mrf.mxu0
      %v838 = vpop.f32.mrf.mxu0
      %839 = vdwg.mxu0
      %v840 = vmul.f32 %v688, 0.35355338
      %v841 = vmul.f32 %v737, 0.35355338
      %v842 = vmul.f32 %v786, 0.35355338
      %v843 = vmul.f32 %v835, 0.35355338
      %v844 = vlaneseq
      %v845 = vshrl.u32 %v844, 7
      %v846 = vlaneseq
      %v847 = vand.u32 %v846, 127
      %vm848 = vcmp.le.s32.totalorder %v847, %v845
      %v849 = vsel %vm848, 1, 0
      %vm850 = vcmp.eq.s32.totalorder %v849, 1
      %v851 = vsel %vm850, %v840, -1e+30
      %v852 = vsel %vm850, %v841, -1e+30
      %v853 = vsel %vm850, %v842, -1e+30
      %v854 = vsel %vm850, %v843, -1e+30
      %vm855 = vcmask 64512
      %v856 = vsel %vm855, %v851, -inf
      %857 = vmax.xlane.f32.xlu0 %v856
      %v858 = vpop.xlane.xlu0 %857
      %v859 = vsel %vm855, %v852, -inf
      %860 = vmax.xlane.f32.xlu0 %v859
      %v861 = vpop.xlane.xlu0 %860
      %v862 = vsel %vm855, %v853, -inf
      %863 = vmax.xlane.f32.xlu0 %v862
      %v864 = vpop.xlane.xlu0 %863
      %v865 = vsel %vm855, %v854, -inf
      %866 = vmax.xlane.f32.xlu0 %v865
      %v867 = vpop.xlane.xlu0 %866
      %v868 = vsub.f32 %v851, %v858
      %v869 = vsub.f32 %v852, %v861
      %v870 = vsub.f32 %v853, %v864
      %v871 = vsub.f32 %v854, %v867
      %v872 = vmul.f32 %v868, 1.442695
      %v873 = vpow.pop %v872
      %v874 = vmul.f32 %v869, 1.442695
      %v875 = vpow.pop %v874
      %v876 = vmul.f32 %v870, 1.442695
      %v877 = vpow.pop %v876
      %v878 = vmul.f32 %v871, 1.442695
      %v879 = vpow.pop %v878
      %v880 = vsel %vm855, %v873, 0.0
      %881 = vadd.xlane.f32.xlu0 %v880
      %v882 = vpop.xlane.xlu0 %881
      %v883 = vsel %vm855, %v875, 0.0
      %884 = vadd.xlane.f32.xlu0 %v883
      %v885 = vpop.xlane.xlu0 %884
      %v886 = vsel %vm855, %v877, 0.0
      %887 = vadd.xlane.f32.xlu0 %v886
      %v888 = vpop.xlane.xlu0 %887
      %v889 = vsel %vm855, %v879, 0.0
      %890 = vadd.xlane.f32.xlu0 %v889
      %v891 = vpop.xlane.xlu0 %890
      %v892 = vrcp.pop %v882
      %v893 = vmul.f32 %v873, %v892
      %v894 = vrcp.pop %v885
      %v895 = vmul.f32 %v875, %v894
      %v896 = vrcp.pop %v888
      %v897 = vmul.f32 %v877, %v896
      %v898 = vrcp.pop %v891
      %v899 = vmul.f32 %v879, %v898
      %v900 = vpack.c.bf16 %v893, %v893
      %v901 = vpack.c.bf16 %v895, %v895
      %v902 = vpack.c.bf16 %v897, %v897
      %v903 = vpack.c.bf16 %v899, %v899
      %v904 = vpack.c.bf16 %v296, %v296
      %v905 = vpack.c.bf16 %v299, %v299
      %v906 = vpack.c.bf16 %v302, %v302
      %v907 = vpack.c.bf16 %v305, %v305
      %909 = vrot.lane.b32.xlu0 %v904, 112
      %v910 = vpop.permute.xlu0 %909
      %v912 = vsel %vm855, %v900, 0
      %vm914 = vcmask 1043456
      %v916 = vsel %vm914, %v910, 0
      %918 = vmatprep.subr.bf16.mxu0 0
      %919 = vmatpush1.bf16.msra.mxu0 0
      %920 = vmatprep.subr.bf16.mxu0 0
      %921 = vmatpush1.bf16.msra.mxu0 0
      %922 = vmatprep.subr.bf16.mxu0 0
      %923 = vmatpush1.bf16.msra.mxu0 0
      %924 = vmatprep.subr.bf16.mxu0 0
      %925 = vmatpush1.bf16.msra.mxu0 0
      %926 = vmatprep.subr.bf16.mxu0 0
      %927 = vmatpush1.bf16.msra.mxu0 0
      %928 = vmatprep.subr.bf16.mxu0 0
      %929 = vmatpush1.bf16.msra.mxu0 0
      %930 = vmatprep.subr.bf16.mxu0 0
      %931 = vmatpush1.bf16.msra.mxu0 0
      %932 = vmatprep.subr.bf16.mxu0 0
      %933 = vmatpush1.bf16.msra.mxu0 %v916
      %934 = vmatprep.subr.bf16.mxu0 0
      %935 = vmatpush2.bf16.msra.mxu0 0
      %936 = vmatprep.subr.bf16.mxu0 0
      %937 = vmatpush2.bf16.msra.mxu0 0
      %938 = vmatprep.subr.bf16.mxu0 0
      %939 = vmatpush2.bf16.msra.mxu0 0
      %940 = vmatprep.subr.bf16.mxu0 0
      %941 = vmatpush2.bf16.msra.mxu0 0
      %942 = vmatprep.subr.bf16.mxu0 0
      %943 = vmatpush2.bf16.msra.mxu0 0
      %944 = vmatprep.subr.bf16.mxu0 0
      %945 = vmatpush2.bf16.msra.mxu0 0
      %946 = vmatprep.subr.bf16.mxu0 0
      %947 = vmatpush2.bf16.msra.mxu0 0
      %948 = vmatprep.subr.bf16.mxu0 0
      %949 = vmatpush2.bf16.msra.mxu0 0
      %950 = vmatprep.mubr.bf16.mxu0 0
      %951 = vmatmul.mubr.bf16.gmra.mxu0 %v912
      %v952 = vpop.f32.mrf.mxu0
      %v953 = vadd.f32 0.0, %v952
      %v954 = vpop.f32.mrf.mxu0
      %v955 = vpop.f32.mrf.mxu0
      %v956 = vpop.f32.mrf.mxu0
      %957 = vdwg.mxu0
      %959 = vrot.lane.b32.xlu0 %v905, 112
      %v960 = vpop.permute.xlu0 %959
      %v962 = vsel %vm855, %v901, 0
      %v965 = vsel %vm914, %v960, 0
      %967 = vmatprep.subr.bf16.mxu0 0
      %968 = vmatpush1.bf16.msra.mxu0 0
      %969 = vmatprep.subr.bf16.mxu0 0
      %970 = vmatpush1.bf16.msra.mxu0 0
      %971 = vmatprep.subr.bf16.mxu0 0
      %972 = vmatpush1.bf16.msra.mxu0 0
      %973 = vmatprep.subr.bf16.mxu0 0
      %974 = vmatpush1.bf16.msra.mxu0 0
      %975 = vmatprep.subr.bf16.mxu0 0
      %976 = vmatpush1.bf16.msra.mxu0 0
      %977 = vmatprep.subr.bf16.mxu0 0
      %978 = vmatpush1.bf16.msra.mxu0 0
      %979 = vmatprep.subr.bf16.mxu0 0
      %980 = vmatpush1.bf16.msra.mxu0 0
      %981 = vmatprep.subr.bf16.mxu0 0
      %982 = vmatpush1.bf16.msra.mxu0 %v965
      %983 = vmatprep.subr.bf16.mxu0 0
      %984 = vmatpush2.bf16.msra.mxu0 0
      %985 = vmatprep.subr.bf16.mxu0 0
      %986 = vmatpush2.bf16.msra.mxu0 0
      %987 = vmatprep.subr.bf16.mxu0 0
      %988 = vmatpush2.bf16.msra.mxu0 0
      %989 = vmatprep.subr.bf16.mxu0 0
      %990 = vmatpush2.bf16.msra.mxu0 0
      %991 = vmatprep.subr.bf16.mxu0 0
      %992 = vmatpush2.bf16.msra.mxu0 0
      %993 = vmatprep.subr.bf16.mxu0 0
      %994 = vmatpush2.bf16.msra.mxu0 0
      %995 = vmatprep.subr.bf16.mxu0 0
      %996 = vmatpush2.bf16.msra.mxu0 0
      %997 = vmatprep.subr.bf16.mxu0 0
      %998 = vmatpush2.bf16.msra.mxu0 0
      %999 = vmatprep.mubr.bf16.mxu0 0
      %1000 = vmatmul.mubr.bf16.gmra.mxu0 %v962
      %v1001 = vpop.f32.mrf.mxu0
      %v1002 = vadd.f32 0.0, %v1001
      %v1003 = vpop.f32.mrf.mxu0
      %v1004 = vpop.f32.mrf.mxu0
      %v1005 = vpop.f32.mrf.mxu0
      %1006 = vdwg.mxu0
      %1008 = vrot.lane.b32.xlu0 %v906, 112
      %v1009 = vpop.permute.xlu0 %1008
      %v1011 = vsel %vm855, %v902, 0
      %v1014 = vsel %vm914, %v1009, 0
      %1016 = vmatprep.subr.bf16.mxu0 0
      %1017 = vmatpush1.bf16.msra.mxu0 0
      %1018 = vmatprep.subr.bf16.mxu0 0
      %1019 = vmatpush1.bf16.msra.mxu0 0
      %1020 = vmatprep.subr.bf16.mxu0 0
      %1021 = vmatpush1.bf16.msra.mxu0 0
      %1022 = vmatprep.subr.bf16.mxu0 0
      %1023 = vmatpush1.bf16.msra.mxu0 0
      %1024 = vmatprep.subr.bf16.mxu0 0
      %1025 = vmatpush1.bf16.msra.mxu0 0
      %1026 = vmatprep.subr.bf16.mxu0 0
      %1027 = vmatpush1.bf16.msra.mxu0 0
      %1028 = vmatprep.subr.bf16.mxu0 0
      %1029 = vmatpush1.bf16.msra.mxu0 0
      %1030 = vmatprep.subr.bf16.mxu0 0
      %1031 = vmatpush1.bf16.msra.mxu0 %v1014
      %1032 = vmatprep.subr.bf16.mxu0 0
      %1033 = vmatpush2.bf16.msra.mxu0 0
      %1034 = vmatprep.subr.bf16.mxu0 0
      %1035 = vmatpush2.bf16.msra.mxu0 0
      %1036 = vmatprep.subr.bf16.mxu0 0
      %1037 = vmatpush2.bf16.msra.mxu0 0
      %1038 = vmatprep.subr.bf16.mxu0 0
      %1039 = vmatpush2.bf16.msra.mxu0 0
      %1040 = vmatprep.subr.bf16.mxu0 0
      %1041 = vmatpush2.bf16.msra.mxu0 0
      %1042 = vmatprep.subr.bf16.mxu0 0
      %1043 = vmatpush2.bf16.msra.mxu0 0
      %1044 = vmatprep.subr.bf16.mxu0 0
      %1045 = vmatpush2.bf16.msra.mxu0 0
      %1046 = vmatprep.subr.bf16.mxu0 0
      %1047 = vmatpush2.bf16.msra.mxu0 0
      %1048 = vmatprep.mubr.bf16.mxu0 0
      %1049 = vmatmul.mubr.bf16.gmra.mxu0 %v1011
      %v1050 = vpop.f32.mrf.mxu0
      %v1051 = vadd.f32 0.0, %v1050
      %v1052 = vpop.f32.mrf.mxu0
      %v1053 = vpop.f32.mrf.mxu0
      %v1054 = vpop.f32.mrf.mxu0
      %1055 = vdwg.mxu0
      %1057 = vrot.lane.b32.xlu0 %v907, 112
      %v1058 = vpop.permute.xlu0 %1057
      %v1060 = vsel %vm855, %v903, 0
      %v1063 = vsel %vm914, %v1058, 0
      %1065 = vmatprep.subr.bf16.mxu0 0
      %1066 = vmatpush1.bf16.msra.mxu0 0
      %1067 = vmatprep.subr.bf16.mxu0 0
      %1068 = vmatpush1.bf16.msra.mxu0 0
      %1069 = vmatprep.subr.bf16.mxu0 0
      %1070 = vmatpush1.bf16.msra.mxu0 0
      %1071 = vmatprep.subr.bf16.mxu0 0
      %1072 = vmatpush1.bf16.msra.mxu0 0
      %1073 = vmatprep.subr.bf16.mxu0 0
      %1074 = vmatpush1.bf16.msra.mxu0 0
      %1075 = vmatprep.subr.bf16.mxu0 0
      %1076 = vmatpush1.bf16.msra.mxu0 0
      %1077 = vmatprep.subr.bf16.mxu0 0
      %1078 = vmatpush1.bf16.msra.mxu0 0
      %1079 = vmatprep.subr.bf16.mxu0 0
      %1080 = vmatpush1.bf16.msra.mxu0 %v1063
      %1081 = vmatprep.subr.bf16.mxu0 0
      %1082 = vmatpush2.bf16.msra.mxu0 0
      %1083 = vmatprep.subr.bf16.mxu0 0
      %1084 = vmatpush2.bf16.msra.mxu0 0
      %1085 = vmatprep.subr.bf16.mxu0 0
      %1086 = vmatpush2.bf16.msra.mxu0 0
      %1087 = vmatprep.subr.bf16.mxu0 0
      %1088 = vmatpush2.bf16.msra.mxu0 0
      %1089 = vmatprep.subr.bf16.mxu0 0
      %1090 = vmatpush2.bf16.msra.mxu0 0
      %1091 = vmatprep.subr.bf16.mxu0 0
      %1092 = vmatpush2.bf16.msra.mxu0 0
      %1093 = vmatprep.subr.bf16.mxu0 0
      %1094 = vmatpush2.bf16.msra.mxu0 0
      %1095 = vmatprep.subr.bf16.mxu0 0
      %1096 = vmatpush2.bf16.msra.mxu0 0
      %1097 = vmatprep.mubr.bf16.mxu0 0
      %1098 = vmatmul.mubr.bf16.gmra.mxu0 %v1060
      %v1099 = vpop.f32.mrf.mxu0
      %v1100 = vadd.f32 0.0, %v1099
      %v1101 = vpop.f32.mrf.mxu0
      %v1102 = vpop.f32.mrf.mxu0
      %v1103 = vpop.f32.mrf.mxu0
      %1104 = vdwg.mxu0
      %1106 = vrot.lane.b32.xlu0 %v1002, 8
      %v1107 = vpop.permute.xlu0 %1106
      %1110 = vrot.lane.b32.xlu0 %v1051, 16
      %v1111 = vpop.permute.xlu0 %1110
      %1114 = vrot.lane.b32.xlu0 %v1100, 24
      %v1115 = vpop.permute.xlu0 %1114
      %v1117 = vsel %vm855, %v953, %v1107
      %vm1118 = vcmask 130048
      %v1119 = vsel %vm1118, %v1117, %v1111
      %vm1120 = vcmask 195584
      %v1121 = vsel %vm1120, %v1119, %v1115
      %v1122 = vpack.c.bf16 %v1121, %v1121
      %v1123 = vld [vmem:[%s3] sm:$0xf]
      %v1124 = vld [vmem:[%s3 + $0x4] sm:$0xf]
      %v1125 = vld [vmem:[%s3 + $0x8] sm:$0xf]
      %v1126 = vld [vmem:[%s3 + $0xc] sm:$0xf]
      %v1127 = vld [vmem:[%s4] sm:$0x1]
      %v1129 = vlaneseq
      %v1130 = vshrl.u32 %v1129, 7
      %v1131 = vsub.s32 0, %v1130
      %v1132 = vrot.slane %v1127, %v1131
      %v1138 = vunpack.c.l.b16 %v1123
      %v1139 = vunpack.c.l.b16 %v1124
      %v1140 = vunpack.c.l.b16 %v1125
      %v1141 = vunpack.c.l.b16 %v1126
      %v1142 = vpack.c.b16 %v1139, %v1138
      %v1143 = vpack.c.b16 %v1141, %v1140
      %vm1146 = vcmask 261120
      %v1148 = vsel %vm1146, %v1122, 0
      %1150 = vmatprep.subr.bf16.mxu0 0
      %1151 = vmatpush1.bf16.msra.mxu0 0
      %1152 = vmatprep.subr.bf16.mxu0 0
      %1153 = vmatpush1.bf16.msra.mxu0 0
      %1154 = vmatprep.subr.bf16.mxu0 0
      %1155 = vmatpush1.bf16.msra.mxu0 0
      %1156 = vmatprep.subr.bf16.mxu0 0
      %1157 = vmatpush1.bf16.msra.mxu0 0
      %1158 = vmatprep.subr.bf16.mxu0 0
      %1159 = vmatpush1.bf16.msra.mxu0 0
      %1160 = vmatprep.subr.bf16.mxu0 0
      %1161 = vmatpush1.bf16.msra.mxu0 0
      %1162 = vmatprep.subr.bf16.mxu0 0
      %1163 = vmatpush1.bf16.msra.mxu0 %v1143
      %1164 = vmatprep.subr.bf16.mxu0 0
      %1165 = vmatpush1.bf16.msra.mxu0 %v1142
      %1166 = vmatprep.subr.bf16.mxu0 0
      %1167 = vmatpush2.bf16.msra.mxu0 0
      %1168 = vmatprep.subr.bf16.mxu0 0
      %1169 = vmatpush2.bf16.msra.mxu0 0
      %1170 = vmatprep.subr.bf16.mxu0 0
      %1171 = vmatpush2.bf16.msra.mxu0 0
      %1172 = vmatprep.subr.bf16.mxu0 0
      %1173 = vmatpush2.bf16.msra.mxu0 0
      %1174 = vmatprep.subr.bf16.mxu0 0
      %1175 = vmatpush2.bf16.msra.mxu0 0
      %1176 = vmatprep.subr.bf16.mxu0 0
      %1177 = vmatpush2.bf16.msra.mxu0 0
      %1178 = vmatprep.subr.bf16.mxu0 0
      %1179 = vmatpush2.bf16.msra.mxu0 0
      %1180 = vmatprep.subr.bf16.mxu0 0
      %1181 = vmatpush2.bf16.msra.mxu0 0
      %1182 = vmatprep.mubr.bf16.mxu0 0
      %1183 = vmatmul.mubr.bf16.gmra.mxu0 %v1148
      %v1184 = vpop.f32.mrf.mxu0
      %v1185 = vadd.f32 %v1132, %v1184
      %v1186 = vpop.f32.mrf.mxu0
      %v1187 = vpop.f32.mrf.mxu0
      %v1188 = vpop.f32.mrf.mxu0
      %1189 = vdwg.mxu0
      %v1190 = vld [vmem:[%s287] sm:$0xff]
      %v1191 = vadd.f32 %v1185, %v1190
      %1192 = vst.msk [vmem:[%s294] sm:$0xff] %vm1146, %v1191
      %p1193 = scmp.lt.s32.totalorder %s21, 1
      %s1194 = scalar_select %p1193, %s21, 1
      %p1195 = scmp.lt.s32.totalorder %s22, 0
      %s1196 = scalar_select %p1195, %s22, 0
      %s1197 = sadd.s32 %s1196, %s1194
      %s1198 = smul.addr %s1197, 8
      %s1199 = scalar_lea.vmem %s6, %s1198
      // Predicated region
      $region45: #{gpt_forward.10} parent=43 // pred_check
        %p1200 = pneg %p187
      $region46: #{gpt_forward.10} parent=43 // pred_check_branch
        %1202 = sbr.rel (%p1200) target = $region48
      $region47: #{gpt_forward.10} parent=43 // pred_region
        _
      $region48: #{gpt_forward.10} parent=43 // pred_fallthru
        _
    $region44: #{gpt_forward.10} parent=5 // pred_fallthru
      _
    %p1203 = scmp.le.s32.totalorder 2, %s12
    // Predicated region
    $region49: #{gpt_forward.10} parent=5 // pred_check
      %p1204 = pneg %p1203
    $region50: #{gpt_forward.10} parent=5 // pred_check_branch
      %1206 = sbr.rel (%p1204) target = $region52
    $region51: #{gpt_forward.10} parent=5 // pred_region
      %s1207 = ssub.s32 %s12, 2
      // Predicated region
      $region53: #{gpt_forward.10} parent=51 // pred_check
        %p1208 = pneg %p193
      $region54: #{gpt_forward.10} parent=51 // pred_check_branch
        %1210 = sbr.rel (%p1208) target = $region56
      $region55: #{gpt_forward.10} parent=51 // pred_region
        %p1211 = scmp.lt.s32.totalorder %s23, 1
        %s1212 = scalar_select %p1211, %s23, 1
        %p1213 = scmp.lt.s32.totalorder %s24, 0
        %s1214 = scalar_select %p1213, %s24, 0
        %s1215 = sadd.s32 %s1214, %s1212
        %s1216 = smul.addr %s1215, 8
        %s1217 = scalar_lea.vmem %s6, %s1216
      $region56: #{gpt_forward.10} parent=51 // pred_fallthru
        _
    $region52: #{gpt_forward.10} parent=5 // pred_fallthru
      _
  $region6: #{gpt_forward.10} parent=0 // loop_footer
    %s16 = sadd.s32 1, %s12
  $region7: #{gpt_forward.10} parent=0 // loop_footer_branch
    %11 = sbr.rel target = $region3
  $region8: #{gpt_forward.10} parent=0 // loop_exit
    _

// kernel: gpt_forward.17
$region0: #{gpt_forward.17}
  #allocation0 [shape = 'u32[]', space=smem, size = 0x4, offset = 0x4, fixed_abs, tag = 'smem constant byte address 0x4 - core index']
  #allocation1 [shape = 'u32[144,128]{1,0:T(1,128)}', space=vmem, size = 0x12000, scoped, tag = 'internal scratch']
  #allocation2 [shape = 'f32[16,128]{1,0:T(8,128)}', space=vmem, size = 0x2000, scoped, tag = 'scratch operand']
  %s0 = inlined_call_operand.vmem [shape: f32[16,32], index: 0, kind: input, shape index: {}]
  %s1 = inlined_call_operand.vmem [shape: f32[1,32], index: 1, kind: input, shape index: {}]
  %s2 = inlined_call_operand.vmem [shape: f32[1,32], index: 2, kind: input, shape index: {}]
  %s3 = inlined_call_operand.vmem [shape: bf16[32,128], index: 3, kind: input, shape index: {}]
  %s4 = inlined_call_operand.hbm [shape: f32[16,128], index: 4, kind: output, shape index: {}]
  %s5 = sld [smem:[#allocation0]]
  $region34: #{gpt_forward.17} parent=0
    _
  %s7 = ssub.s32 1, %s5
  %s8 = scalar_select 0, %s7, %s5
  $region1: #{gpt_forward.17} parent=0
    #allocation3 [shape = 'u8[8192]{0}', space=vmem, size = 0x2000, scoped, tag = 'output window, operand 0, single buffered']
    #allocation4 [shape = 's32[1]{0}', space=sflag, size = 0x4, scoped, tag = 'scoped memory for gpt_forward.17']
    %9 = vsyncpa [#allocation4], 0
    // Predicated region
    $region2: #{gpt_forward.17} parent=1 // pred_check
      _
    $region3: #{gpt_forward.17} parent=1 // pred_check_branch
      %11 = sbr.rel (0) target = $region5
    $region4: #{gpt_forward.17} parent=1 // pred_region
      _
    $region5: #{gpt_forward.17} parent=1 // pred_fallthru
      _
    // Predicated region
    $region6: #{gpt_forward.17} parent=1 // pred_check
      _
    $region7: #{gpt_forward.17} parent=1 // pred_check_branch
      %13 = sbr.rel (0) target = $region9
    $region8: #{gpt_forward.17} parent=1 // pred_region
      _
    $region9: #{gpt_forward.17} parent=1 // pred_fallthru
      _
    // Predicated region
    $region10: #{gpt_forward.17} parent=1 // pred_check
      _
    $region11: #{gpt_forward.17} parent=1 // pred_check_branch
      %15 = sbr.rel (0) target = $region13
    $region12: #{gpt_forward.17} parent=1 // pred_region
      _
    $region13: #{gpt_forward.17} parent=1 // pred_fallthru
      _
    // Predicated region
    $region14: #{gpt_forward.17} parent=1 // pred_check
      _
    $region15: #{gpt_forward.17} parent=1 // pred_check_branch
      %17 = sbr.rel (0) target = $region17
    $region16: #{gpt_forward.17} parent=1 // pred_region
      _
    $region17: #{gpt_forward.17} parent=1 // pred_fallthru
      _
    %p19 = scmp.eq.s32.totalorder 0, 0
    // Predicated region
    $region18: #{gpt_forward.17} parent=1 // pred_check
      %p20 = pneg %p19
    $region19: #{gpt_forward.17} parent=1 // pred_check_branch
      %22 = sbr.rel (%p20) target = $region21
    $region20: #{gpt_forward.17} parent=1 // pred_region
      %23 = vst [vmem:[#allocation2] sm:$0xff] 0.0
      %24 = vst [vmem:[#allocation2 + $0x8] sm:$0xff] 0.0
    $region21: #{gpt_forward.17} parent=1 // pred_fallthru
      _
    %v25 = vld [vmem:[%s0] sm:$0xff]
    %v26 = vld [vmem:[%s0 + $0x8] sm:$0xff]
    %vm27 = vcmask 261120
    %v28 = vsel %vm27, %v25, 0.0
    %29 = vadd.xlane.f32.xlu0 %v28
    %v30 = vpop.xlane.xlu0 %29
    %v31 = vsel %vm27, %v26, 0.0
    %32 = vadd.xlane.f32.xlu0 %v31
    %v33 = vpop.xlane.xlu0 %32
    %v34 = vrcp.pop 32.0
    %v35 = vmul.f32 %v30, %v34
    %v36 = vmul.f32 %v33, %v34
    %v37 = vsub.f32 %v25, %v35
    %v38 = vsub.f32 %v26, %v36
    %v39 = vmul.f32 %v37, %v37
    %v40 = vmul.f32 %v38, %v38
    %v41 = vsel %vm27, %v39, 0.0
    %42 = vadd.xlane.f32.xlu0 %v41
    %v43 = vpop.xlane.xlu0 %42
    %v44 = vsel %vm27, %v40, 0.0
    %45 = vadd.xlane.f32.xlu0 %v44
    %v46 = vpop.xlane.xlu0 %45
    %v47 = vmul.f32 %v43, %v34
    %v48 = vmul.f32 %v46, %v34
    %v49 = vadd.f32 %v47, 1e-05
    %v50 = vadd.f32 %v48, 1e-05
    %v51 = vrsqrt.pop %v49
    %v52 = vrsqrt.pop %v50
    %v53 = vmul.f32 %v37, %v51
    %v54 = vmul.f32 %v38, %v52
    %v55 = vld [vmem:[%s1] sm:$0x1]
    %v57 = vlaneseq
    %v58 = vshrl.u32 %v57, 7
    %v59 = vsub.s32 0, %v58
    %v60 = vrot.slane %v55, %v59
    %v62 = vmul.f32 %v53, %v60
    %v63 = vmul.f32 %v54, %v60
    %v64 = vld [vmem:[%s2] sm:$0x1]
    %v66 = vlaneseq
    %v67 = vshrl.u32 %v66, 7
    %v68 = vsub.s32 0, %v67
    %v69 = vrot.slane %v64, %v68
    %v71 = vadd.f32 %v62, %v69
    %v72 = vadd.f32 %v63, %v69
    %v73 = vld [vmem:[#allocation2] sm:$0xff]
    %v74 = vld [vmem:[#allocation2 + $0x8] sm:$0xff]
    %v75 = vpack.c.bf16 %v72, %v71
    %v76 = vld [vmem:[%s3] sm:$0xf]
    %v77 = vld [vmem:[%s3 + $0x4] sm:$0xf]
    %v78 = vld [vmem:[%s3 + $0x8] sm:$0xf]
    %v79 = vld [vmem:[%s3 + $0xc] sm:$0xf]
    %v84 = vunpack.c.l.b16 %v76
    %v85 = vunpack.c.l.b16 %v77
    %v86 = vunpack.c.l.b16 %v78
    %v87 = vunpack.c.l.b16 %v79
    %v88 = vpack.c.b16 %v85, %v84
    %v89 = vpack.c.b16 %v87, %v86
    %v93 = vsel %vm27, %v75, 0
    %95 = vmatprep.subr.bf16.mxu0 0
    %96 = vmatpush1.bf16.msra.mxu0 0
    %97 = vmatprep.subr.bf16.mxu0 0
    %98 = vmatpush1.bf16.msra.mxu0 0
    %99 = vmatprep.subr.bf16.mxu0 0
    %100 = vmatpush1.bf16.msra.mxu0 0
    %101 = vmatprep.subr.bf16.mxu0 0
    %102 = vmatpush1.bf16.msra.mxu0 0
    %103 = vmatprep.subr.bf16.mxu0 0
    %104 = vmatpush1.bf16.msra.mxu0 0
    %105 = vmatprep.subr.bf16.mxu0 0
    %106 = vmatpush1.bf16.msra.mxu0 0
    %107 = vmatprep.subr.bf16.mxu0 0
    %108 = vmatpush1.bf16.msra.mxu0 %v89
    %109 = vmatprep.subr.bf16.mxu0 0
    %110 = vmatpush1.bf16.msra.mxu0 %v88
    %111 = vmatprep.subr.bf16.mxu0 0
    %112 = vmatpush2.bf16.msra.mxu0 0
    %113 = vmatprep.subr.bf16.mxu0 0
    %114 = vmatpush2.bf16.msra.mxu0 0
    %115 = vmatprep.subr.bf16.mxu0 0
    %116 = vmatpush2.bf16.msra.mxu0 0
    %117 = vmatprep.subr.bf16.mxu0 0
    %118 = vmatpush2.bf16.msra.mxu0 0
    %119 = vmatprep.subr.bf16.mxu0 0
    %120 = vmatpush2.bf16.msra.mxu0 0
    %121 = vmatprep.subr.bf16.mxu0 0
    %122 = vmatpush2.bf16.msra.mxu0 0
    %123 = vmatprep.subr.bf16.mxu0 0
    %124 = vmatpush2.bf16.msra.mxu0 0
    %125 = vmatprep.subr.bf16.mxu0 0
    %126 = vmatpush2.bf16.msra.mxu0 0
    %127 = vmatprep.mubr.bf16.mxu0 0
    %128 = vmatmul.mubr.bf16.gmra.mxu0 %v93
    %v129 = vpop.f32.mrf.mxu0
    %v130 = vadd.f32 0.0, %v129
    %v131 = vpop.f32.mrf.mxu0
    %v132 = vpop.f32.mrf.mxu0
    %v133 = vadd.f32 0.0, %v132
    %v134 = vpop.f32.mrf.mxu0
    %135 = vdwg.mxu0
    %v136 = vadd.f32 %v73, %v130
    %v137 = vadd.f32 %v74, %v133
    %138 = vst [vmem:[#allocation2] sm:$0xff] %v136
    %139 = vst [vmem:[#allocation2 + $0x8] sm:$0xff] %v137
    // Predicated region
    $region22: #{gpt_forward.17} parent=1 // pred_check
      %p140 = pneg %p19
    $region23: #{gpt_forward.17} parent=1 // pred_check_branch
      %142 = sbr.rel (%p140) target = $region25
    $region24: #{gpt_forward.17} parent=1 // pred_region
      %v143 = vld [vmem:[#allocation2] sm:$0xff]
      %v144 = vld [vmem:[#allocation2 + $0x8] sm:$0xff]
      %145 = vst [vmem:[#allocation3] sm:$0xff] %v143
      %146 = vst [vmem:[#allocation3 + $0x8] sm:$0xff] %v144
    $region25: #{gpt_forward.17} parent=1 // pred_fallthru
      _
    // Predicated region
    $region26: #{gpt_forward.17} parent=1 // pred_check
      _
    $region27: #{gpt_forward.17} parent=1 // pred_check_branch
      %148 = sbr.rel (0) target = $region29
    $region28: #{gpt_forward.17} parent=1 // pred_region
      %s150 = ssub.s32 256, 256
      %151 = vsyncadd [#allocation4], %s150
      %s152 = sshll.u32 [#allocation3], 4
      %s153 = int_to_ptr.vmem [resolvable:$true] %s152
      %158 = dma.vmem_to_hbm [thread:$0]  %s153, 256, %s4, [#allocation4], 128, 128, 8
    $region29: #{gpt_forward.17} parent=1 // pred_fallthru
      _
    // Predicated region
    $region30: #{gpt_forward.17} parent=1 // pred_check
      _
    $region31: #{gpt_forward.17} parent=1 // pred_check_branch
      %160 = sbr.rel (0) target = $region33
    $region32: #{gpt_forward.17} parent=1 // pred_region
      %161 = dma.done [#allocation4], 256
    $region33: #{gpt_forward.17} parent=1 // pred_fallthru
      _
    %162 = vsyncpa [#allocation4], 1

</llo_original>
